<compile_context>
chip_gen: v5e
topology: v5e:2x2
jax: 0.10.0
libtpu: 0.0.40
codegen_flags: <defaults>
</compile_context>

<pallas_src>
import functools

import jax
import jax.numpy as jnp
import numpy as np
from jax.experimental import pallas as pl
from jax.experimental.pallas import tpu as pltpu


# ------------------------------ fused kernel -------------------------------

_NT = (((1,), (1,)), ((), ()))   # a (M,K) . b (N,K) -> a @ b.T  (PyTorch Linear layout)
_NN = (((1,), (0,)), ((), ()))   # a (M,K) . b (K,N) -> a @ b
_NEG = -1e30                     # additive mask for cross-batch positions


def _mm(a, b, dims):
    """MXU matmul with f32 accumulation; operands are pre-cast by the caller."""
    return jax.lax.dot_general(a, b, dimension_numbers=dims,
                               preferred_element_type=jnp.float32)


def _decoder_kernel(tgt_ref, posd1_ref, sal_ref, pose1_ref, tmpl_ref, pose2_ref,
                    wq_ref, wk_ref, wv_ref, bq_ref, bk_ref, bv_ref,
                    out_w_ref, out_b_ref,
                    w1_ref, b1_ref, w2_ref, b2_ref,
                    ln1_g_ref, ln1_b_ref, ln2_g_ref, ln2_b_ref,
                    ln3_g_ref, ln3_b_ref,
                    o_ref, *, nhead, n_batch, eps):
    E = o_ref.shape[-1]
    D = E // nhead
    scale = 1.0 / float(D) ** 0.5
    bf16 = jnp.bfloat16

    # Weights arrive pre-split and already bf16; biases / LN params are f32 rows.
    wq, wk, wv = wq_ref[...], wk_ref[...], wv_ref[...]
    bq, bk, bv = bq_ref[...], bk_ref[...], bv_ref[...]
    out_w, out_b = out_w_ref[...], out_b_ref[...]
    w1, b1 = w1_ref[...], b1_ref[...]
    w2, b2 = w2_ref[...], b2_ref[...]

    def layer_norm(y, g_ref, b_ref):                       # f32 math
        mu = jnp.mean(y, axis=-1, keepdims=True)
        c = y - mu
        var = jnp.mean(c * c, axis=-1, keepdims=True)
        return c * jax.lax.rsqrt(var + eps) * g_ref[...] + b_ref[...]

    def batch_bias(nq, nk):
        # rows are (seq, batch) flattened row-major -> batch id = row % n_batch
        qb = jax.lax.broadcasted_iota(jnp.int32, (nq, nk), 0) % n_batch
        kb = jax.lax.broadcasted_iota(jnp.int32, (nq, nk), 1) % n_batch
        return jnp.where(qb == kb, 0.0, _NEG).astype(jnp.float32)

    def attention(q, k, v, bias):
        """q (NQ,E), k/v (NK,E) already projected (f32); bias blocks cross-batch."""
        qb = (q * scale).astype(bf16)                      # hoisted casts
        kb = k.astype(bf16)
        vb = v.astype(bf16)
        heads = []
        for h in range(nhead):                             # short static unroll
            c = slice(h * D, (h + 1) * D)
            s = _mm(qb[:, c], kb[:, c], _NT) + bias        # (NQ, NK) f32, masked
            m = jnp.max(s, axis=-1, keepdims=True)
            e = jnp.exp(s - m)
            p = e / jnp.sum(e, axis=-1, keepdims=True)     # exact reciprocal
            heads.append(_mm(p.astype(bf16), vb[:, c], _NN))   # (NQ, D)
        o = jnp.concatenate(heads, axis=-1)                # (NQ, E)
        return _mm(o.astype(bf16), out_w, _NT) + out_b     # single out-projection

    # --- positional-embedding adds folded into the kernel (VPU slack) ---
    tgt = tgt_ref[...]                                     # (N*L,  E) f32
    sal = sal_ref[...]                                     # (N*S1, E)
    tmpl = tmpl_ref[...]                                   # (N*S2, E)
    q1_in = tgt + posd1_ref[...]
    k1_in = sal + pose1_ref[...]
    k2_in = tmpl + pose2_ref[...]

    # --- dense Q/K/V projections over full row slabs ---
    q1 = _mm(q1_in.astype(bf16), wq, _NT) + bq
    k1 = _mm(k1_in.astype(bf16), wk, _NT) + bk
    v1 = _mm(sal.astype(bf16), wv, _NT) + bv
    k2 = _mm(k2_in.astype(bf16), wk, _NT) + bk
    v2 = _mm(tmpl.astype(bf16), wv, _NT) + bv

    bias1 = batch_bias(tgt.shape[0], sal.shape[0])
    bias2 = batch_bias(tgt.shape[0], tmpl.shape[0])

    # cross-attention 1: q = tgt+pos_dec1, k = saliency+pos_enc1, v = saliency
    a1 = attention(q1, k1, v1, bias1)
    t1 = layer_norm(tgt + a1, ln1_g_ref, ln1_b_ref)

    # cross-attention 2 (same MHA weights): q = norm1 output, k/v from template
    q2 = _mm(t1.astype(bf16), wq, _NT) + bq
    a2 = attention(q2, k2, v2, bias2)
    # NOTE: residual uses the ORIGINAL tgt, exactly as in the PyTorch module.
    x = layer_norm(tgt + a2, ln2_g_ref, ln2_b_ref)

    # feed-forward + norm3, slab-wise
    h = jnp.maximum(_mm(x.astype(bf16), w1, _NT) + b1, 0.0)
    y = _mm(h.astype(bf16), w2, _NT) + b2
    o_ref[...] = layer_norm(x + y, ln3_g_ref, ln3_b_ref).astype(o_ref.dtype)


# ------------------------------ model glue ---------------------------------

def decoder_forward(params, tgt, saliency, template,
                    pos_enc1=None, pos_dec1=None, pos_enc2=None, *, nhead):
    L, N, E = tgt.shape
    f32, bf16 = jnp.float32, jnp.bfloat16

    def flat(x):                         # (seq, batch, E) -> (seq*batch, E), free
        return x.reshape(-1, E).astype(f32)

    def flat_or_zero(pos, like):
        if pos is None:
            return jnp.zeros((like.shape[0] * like.shape[1], E), f32)
        return flat(pos)

    row = lambda a: a.reshape(1, -1).astype(f32)

    # Pre-split + pre-cast MHA weights host-side (pure layout plumbing).
    mha = params["mha"]
    in_w = mha["in_w"].astype(bf16)
    in_b = mha["in_b"]
    wq, wk, wv = in_w[0:E], in_w[E:2 * E], in_w[2 * E:3 * E]
    bq, bk, bv = row(in_b[0:E]), row(in_b[E:2 * E]), row(in_b[2 * E:3 * E])

    kernel = functools.partial(_decoder_kernel, nhead=nhead, n_batch=N, eps=1e-5)

    n_in = 24
    vmem_spec = pl.BlockSpec(memory_space=pltpu.MemorySpace.VMEM)

    out2d = pl.pallas_call(
        kernel,
        out_shape=jax.ShapeDtypeStruct((L * N, E), f32),
        in_specs=[vmem_spec] * n_in,
        out_specs=pl.BlockSpec(memory_space=pltpu.MemorySpace.VMEM),
    )(flat(tgt), flat_or_zero(pos_dec1, tgt),
      flat(saliency), flat_or_zero(pos_enc1, saliency),
      flat(template), flat_or_zero(pos_enc2, template),
      wq, wk, wv, bq, bk, bv,
      mha["out_w"].astype(bf16), row(mha["out_b"]),
      params["w1"].astype(bf16), row(params["b1"]),
      params["w2"].astype(bf16), row(params["b2"]),
      row(params["ln1_g"]), row(params["ln1_b"]),
      row(params["ln2_g"]), row(params["ln2_b"]),
      row(params["ln3_g"]), row(params["ln3_b"]))

    return out2d.reshape(L, N, E)        # free row-major reshape, no transpose


def init_params(key, d_model, dim_feedforward):
    ks = jax.random.split(key, 8)
    s = 0.1
    return {
        "mha": {
            "in_w": s * jax.random.normal(ks[0], (3 * d_model, d_model), jnp.float32),
            "in_b": s * jax.random.normal(ks[1], (3 * d_model,), jnp.float32),
            "out_w": s * jax.random.normal(ks[2], (d_model, d_model), jnp.float32),
            "out_b": s * jax.random.normal(ks[3], (d_model,), jnp.float32),
        },
        "w1": s * jax.random.normal(ks[4], (dim_feedforward, d_model), jnp.float32),
        "b1": s * jax.random.normal(ks[5], (dim_feedforward,), jnp.float32),
        "w2": s * jax.random.normal(ks[6], (d_model, dim_feedforward), jnp.float32),
        "b2": s * jax.random.normal(ks[7], (d_model,), jnp.float32),
        "ln1_g": jnp.ones((d_model,), jnp.float32),
        "ln1_b": jnp.zeros((d_model,), jnp.float32),
        "ln2_g": jnp.ones((d_model,), jnp.float32),
        "ln2_b": jnp.zeros((d_model,), jnp.float32),
        "ln3_g": jnp.ones((d_model,), jnp.float32),
        "ln3_b": jnp.zeros((d_model,), jnp.float32),
    }


# ----------------------- pure-JAX f32 reference -----------------------------

def _reference_forward(params, tgt, saliency, template,
                       pos_enc1, pos_dec1, pos_enc2, *, nhead):
    E = tgt.shape[-1]
    D = E // nhead
    p = params["mha"]

    def wpe(t, pos):
        return t if pos is None else t + pos

    def mha(q_in, k_in, v_in):
        L, N, _ = q_in.shape
        S = k_in.shape[0]
        q = q_in @ p["in_w"][:E].T + p["in_b"][:E]
        k = k_in @ p["in_w"][E:2 * E].T + p["in_b"][E:2 * E]
        v = v_in @ p["in_w"][2 * E:].T + p["in_b"][2 * E:]

        def heads(x, T):
            return x.reshape(T, N, nhead, D).transpose(1, 2, 0, 3)  # (N,H,T,D)

        qh, kh, vh = heads(q, L), heads(k, S), heads(v, S)
        s = jnp.einsum("nhld,nhsd->nhls", qh, kh) / float(D) ** 0.5
        w = jax.nn.softmax(s, axis=-1)
        o = jnp.einsum("nhls,nhsd->nhld", w, vh)
        o = o.transpose(2, 0, 1, 3).reshape(L, N, E)
        return o @ p["out_w"].T + p["out_b"]

    def ln(x, g, b):
        mu = x.mean(-1, keepdims=True)
        var = ((x - mu) ** 2).mean(-1, keepdims=True)
        return (x - mu) / jnp.sqrt(var + 1e-5) * g + b

    t2 = mha(wpe(tgt, pos_dec1), wpe(saliency, pos_enc1), saliency)
    t2 = ln(tgt + t2, params["ln1_g"], params["ln1_b"])
    t2b = mha(t2, wpe(template, pos_enc2), template)
    x = ln(tgt + t2b, params["ln2_g"], params["ln2_b"])
    h = jnp.maximum(x @ params["w1"].T + params["b1"], 0.0)
    y = h @ params["w2"].T + params["b2"]
    return ln(x + y, params["ln3_g"], params["ln3_b"])


if __name__ == "__main__":
    d_model, nhead, dim_ff = 32, 4, 64
    L, S_sal, S_tmpl, B = 8, 8, 8, 2

    key = jax.random.PRNGKey(0)
    kp, k1, k2, k3, k4, k5, k6 = jax.random.split(key, 7)

    params = init_params(kp, d_model, dim_ff)
    tgt = jax.random.normal(k1, (L, B, d_model), jnp.float32)
    saliency = jax.random.normal(k2, (S_sal, B, d_model), jnp.float32)
    template = jax.random.normal(k3, (S_tmpl, B, d_model), jnp.float32)
    pos_enc1 = jax.random.normal(k4, (S_sal, B, d_model), jnp.float32)
    pos_dec1 = jax.random.normal(k5, (L, B, d_model), jnp.float32)
    pos_enc2 = jax.random.normal(k6, (S_tmpl, B, d_model), jnp.float32)

    fwd = jax.jit(functools.partial(decoder_forward, nhead=nhead))
    out = fwd(params, tgt, saliency, template, pos_enc1, pos_dec1, pos_enc2)
    jax.block_until_ready(out)
    assert out.shape == (L, B, d_model)

    # Sanity check vs. a pure-JAX f32 reference (kernel uses bf16 MXU operands
    # with f32 accumulation; softmax denominator is exact).
    ref = _reference_forward(params, tgt, saliency, template,
                             pos_enc1, pos_dec1, pos_enc2, nhead=nhead)
    np.testing.assert_allclose(np.asarray(out), np.asarray(ref),
                               rtol=5e-2, atol=1e-1)
    print("KERNEL_OK")
</pallas_src>

<mosaic_0001>
module attributes {stable_mosaic.version = 11 : i64} {
  func.func @_decoder_kernel(%arg0: memref<16x32xf32, #tpu.memory_space<vmem>>, %arg1: memref<16x32xf32, #tpu.memory_space<vmem>>, %arg2: memref<16x32xf32, #tpu.memory_space<vmem>>, %arg3: memref<16x32xf32, #tpu.memory_space<vmem>>, %arg4: memref<16x32xf32, #tpu.memory_space<vmem>>, %arg5: memref<16x32xf32, #tpu.memory_space<vmem>>, %arg6: memref<32x32xbf16, #tpu.memory_space<vmem>>, %arg7: memref<32x32xbf16, #tpu.memory_space<vmem>>, %arg8: memref<32x32xbf16, #tpu.memory_space<vmem>>, %arg9: memref<1x32xf32, #tpu.memory_space<vmem>>, %arg10: memref<1x32xf32, #tpu.memory_space<vmem>>, %arg11: memref<1x32xf32, #tpu.memory_space<vmem>>, %arg12: memref<32x32xbf16, #tpu.memory_space<vmem>>, %arg13: memref<1x32xf32, #tpu.memory_space<vmem>>, %arg14: memref<64x32xbf16, #tpu.memory_space<vmem>>, %arg15: memref<1x64xf32, #tpu.memory_space<vmem>>, %arg16: memref<32x64xbf16, #tpu.memory_space<vmem>>, %arg17: memref<1x32xf32, #tpu.memory_space<vmem>>, %arg18: memref<1x32xf32, #tpu.memory_space<vmem>>, %arg19: memref<1x32xf32, #tpu.memory_space<vmem>>, %arg20: memref<1x32xf32, #tpu.memory_space<vmem>>, %arg21: memref<1x32xf32, #tpu.memory_space<vmem>>, %arg22: memref<1x32xf32, #tpu.memory_space<vmem>>, %arg23: memref<1x32xf32, #tpu.memory_space<vmem>>, %arg24: memref<16x32xf32, #tpu.memory_space<vmem>>) attributes {dimension_semantics = [], scalar_prefetch = 0 : i64, scratch_operands = 0 : i64, tpu.core_type = #tpu.core_type<tc>} {
    %c0 = arith.constant 0 : index
    %c0_0 = arith.constant 0 : index
    %0 = vector.load %arg6[%c0, %c0_0] : memref<32x32xbf16, #tpu.memory_space<vmem>>, vector<32x32xbf16>
    %c0_1 = arith.constant 0 : index
    %c0_2 = arith.constant 0 : index
    %1 = vector.load %arg7[%c0_1, %c0_2] : memref<32x32xbf16, #tpu.memory_space<vmem>>, vector<32x32xbf16>
    %c0_3 = arith.constant 0 : index
    %c0_4 = arith.constant 0 : index
    %2 = vector.load %arg8[%c0_3, %c0_4] : memref<32x32xbf16, #tpu.memory_space<vmem>>, vector<32x32xbf16>
    %c0_5 = arith.constant 0 : index
    %c0_6 = arith.constant 0 : index
    %3 = vector.load %arg9[%c0_5, %c0_6] : memref<1x32xf32, #tpu.memory_space<vmem>>, vector<1x32xf32>
    %c0_7 = arith.constant 0 : index
    %c0_8 = arith.constant 0 : index
    %4 = vector.load %arg10[%c0_7, %c0_8] : memref<1x32xf32, #tpu.memory_space<vmem>>, vector<1x32xf32>
    %c0_9 = arith.constant 0 : index
    %c0_10 = arith.constant 0 : index
    %5 = vector.load %arg11[%c0_9, %c0_10] : memref<1x32xf32, #tpu.memory_space<vmem>>, vector<1x32xf32>
    %c0_11 = arith.constant 0 : index
    %c0_12 = arith.constant 0 : index
    %6 = vector.load %arg12[%c0_11, %c0_12] : memref<32x32xbf16, #tpu.memory_space<vmem>>, vector<32x32xbf16>
    %c0_13 = arith.constant 0 : index
    %c0_14 = arith.constant 0 : index
    %7 = vector.load %arg13[%c0_13, %c0_14] : memref<1x32xf32, #tpu.memory_space<vmem>>, vector<1x32xf32>
    %c0_15 = arith.constant 0 : index
    %c0_16 = arith.constant 0 : index
    %8 = vector.load %arg14[%c0_15, %c0_16] : memref<64x32xbf16, #tpu.memory_space<vmem>>, vector<64x32xbf16>
    %c0_17 = arith.constant 0 : index
    %c0_18 = arith.constant 0 : index
    %9 = vector.load %arg15[%c0_17, %c0_18] : memref<1x64xf32, #tpu.memory_space<vmem>>, vector<1x64xf32>
    %c0_19 = arith.constant 0 : index
    %c0_20 = arith.constant 0 : index
    %10 = vector.load %arg16[%c0_19, %c0_20] : memref<32x64xbf16, #tpu.memory_space<vmem>>, vector<32x64xbf16>
    %c0_21 = arith.constant 0 : index
    %c0_22 = arith.constant 0 : index
    %11 = vector.load %arg17[%c0_21, %c0_22] : memref<1x32xf32, #tpu.memory_space<vmem>>, vector<1x32xf32>
    %c0_23 = arith.constant 0 : index
    %c0_24 = arith.constant 0 : index
    %12 = vector.load %arg0[%c0_23, %c0_24] : memref<16x32xf32, #tpu.memory_space<vmem>>, vector<16x32xf32>
    %c0_25 = arith.constant 0 : index
    %c0_26 = arith.constant 0 : index
    %13 = vector.load %arg2[%c0_25, %c0_26] : memref<16x32xf32, #tpu.memory_space<vmem>>, vector<16x32xf32>
    %c0_27 = arith.constant 0 : index
    %c0_28 = arith.constant 0 : index
    %14 = vector.load %arg4[%c0_27, %c0_28] : memref<16x32xf32, #tpu.memory_space<vmem>>, vector<16x32xf32>
    %c0_29 = arith.constant 0 : index
    %c0_30 = arith.constant 0 : index
    %15 = vector.load %arg1[%c0_29, %c0_30] : memref<16x32xf32, #tpu.memory_space<vmem>>, vector<16x32xf32>
    %16 = arith.addf %12, %15 : vector<16x32xf32>
    %c0_31 = arith.constant 0 : index
    %c0_32 = arith.constant 0 : index
    %17 = vector.load %arg3[%c0_31, %c0_32] : memref<16x32xf32, #tpu.memory_space<vmem>>, vector<16x32xf32>
    %18 = arith.addf %13, %17 : vector<16x32xf32>
    %c0_33 = arith.constant 0 : index
    %c0_34 = arith.constant 0 : index
    %19 = vector.load %arg5[%c0_33, %c0_34] : memref<16x32xf32, #tpu.memory_space<vmem>>, vector<16x32xf32>
    %20 = arith.addf %14, %19 : vector<16x32xf32>
    %21 = arith.truncf %16 : vector<16x32xf32> to vector<16x32xbf16>
    %cst = arith.constant dense<0.000000e+00> : vector<16x32xf32>
    %22 = tpu.matmul %21, %0, %cst {dimension_numbers = #tpu.dot_dimension_numbers<[1], [1], [0], [0], [0, 0, 1, 0], [], []>} : vector<16x32xbf16>, vector<32x32xbf16>, vector<16x32xf32> -> vector<16x32xf32>
    %23 = vector.broadcast %3 : vector<1x32xf32> to vector<16x32xf32>
    %24 = arith.addf %22, %23 : vector<16x32xf32>
    %25 = arith.truncf %18 : vector<16x32xf32> to vector<16x32xbf16>
    %cst_35 = arith.constant dense<0.000000e+00> : vector<16x32xf32>
    %26 = tpu.matmul %25, %1, %cst_35 {dimension_numbers = #tpu.dot_dimension_numbers<[1], [1], [0], [0], [0, 0, 1, 0], [], []>} : vector<16x32xbf16>, vector<32x32xbf16>, vector<16x32xf32> -> vector<16x32xf32>
    %27 = vector.broadcast %4 : vector<1x32xf32> to vector<16x32xf32>
    %28 = arith.addf %26, %27 : vector<16x32xf32>
    %29 = arith.truncf %13 : vector<16x32xf32> to vector<16x32xbf16>
    %cst_36 = arith.constant dense<0.000000e+00> : vector<16x32xf32>
    %30 = tpu.matmul %29, %2, %cst_36 {dimension_numbers = #tpu.dot_dimension_numbers<[1], [1], [0], [0], [0, 0, 1, 0], [], []>} : vector<16x32xbf16>, vector<32x32xbf16>, vector<16x32xf32> -> vector<16x32xf32>
    %31 = vector.broadcast %5 : vector<1x32xf32> to vector<16x32xf32>
    %32 = arith.addf %30, %31 : vector<16x32xf32>
    %33 = arith.truncf %20 : vector<16x32xf32> to vector<16x32xbf16>
    %cst_37 = arith.constant dense<0.000000e+00> : vector<16x32xf32>
    %34 = tpu.matmul %33, %1, %cst_37 {dimension_numbers = #tpu.dot_dimension_numbers<[1], [1], [0], [0], [0, 0, 1, 0], [], []>} : vector<16x32xbf16>, vector<32x32xbf16>, vector<16x32xf32> -> vector<16x32xf32>
    %35 = vector.broadcast %4 : vector<1x32xf32> to vector<16x32xf32>
    %36 = arith.addf %34, %35 : vector<16x32xf32>
    %37 = arith.truncf %14 : vector<16x32xf32> to vector<16x32xbf16>
    %cst_38 = arith.constant dense<0.000000e+00> : vector<16x32xf32>
    %38 = tpu.matmul %37, %2, %cst_38 {dimension_numbers = #tpu.dot_dimension_numbers<[1], [1], [0], [0], [0, 0, 1, 0], [], []>} : vector<16x32xbf16>, vector<32x32xbf16>, vector<16x32xf32> -> vector<16x32xf32>
    %39 = vector.broadcast %5 : vector<1x32xf32> to vector<16x32xf32>
    %40 = arith.addf %38, %39 : vector<16x32xf32>
    %41 = tpu.iota {dimensions = array<i32: 0>} : vector<16x16xi32>
    %c2_i32 = arith.constant 2 : i32
    %c0_i32 = arith.constant 0 : i32
    %42 = arith.cmpi eq, %c2_i32, %c0_i32 : i32
    %c1_i32 = arith.constant 1 : i32
    %43 = arith.select %42, %c1_i32, %c2_i32 : i32
    %44 = vector.broadcast %43 : i32 to vector<16x16xi32>
    %45 = arith.remsi %41, %44 : vector<16x16xi32>
    %c0_i32_39 = arith.constant 0 : i32
    %46 = vector.broadcast %c0_i32_39 : i32 to vector<16x16xi32>
    %47 = arith.cmpi ne, %45, %46 : vector<16x16xi32>
    %c0_i32_40 = arith.constant 0 : i32
    %48 = vector.broadcast %c0_i32_40 : i32 to vector<16x16xi32>
    %49 = arith.cmpi slt, %45, %48 : vector<16x16xi32>
    %c0_i32_41 = arith.constant 0 : i32
    %50 = arith.cmpi slt, %43, %c0_i32_41 : i32
    %51 = vector.broadcast %50 : i1 to vector<16x16xi1>
    %52 = vector.broadcast %51 : vector<16x16xi1> to vector<16x16xi1>
    %53 = arith.xori %49, %52 : vector<16x16xi1>
    %54 = arith.andi %53, %47 : vector<16x16xi1>
    %55 = vector.broadcast %43 : i32 to vector<16x16xi32>
    %56 = arith.addi %45, %55 : vector<16x16xi32>
    %57 = arith.select %54, %56, %45 : vector<16x16xi1>, vector<16x16xi32>
    %58 = tpu.iota {dimensions = array<i32: 1>} : vector<16x16xi32>
    %c2_i32_42 = arith.constant 2 : i32
    %c0_i32_43 = arith.constant 0 : i32
    %59 = arith.cmpi eq, %c2_i32_42, %c0_i32_43 : i32
    %c1_i32_44 = arith.constant 1 : i32
    %60 = arith.select %59, %c1_i32_44, %c2_i32_42 : i32
    %61 = vector.broadcast %60 : i32 to vector<16x16xi32>
    %62 = arith.remsi %58, %61 : vector<16x16xi32>
    %c0_i32_45 = arith.constant 0 : i32
    %63 = vector.broadcast %c0_i32_45 : i32 to vector<16x16xi32>
    %64 = arith.cmpi ne, %62, %63 : vector<16x16xi32>
    %c0_i32_46 = arith.constant 0 : i32
    %65 = vector.broadcast %c0_i32_46 : i32 to vector<16x16xi32>
    %66 = arith.cmpi slt, %62, %65 : vector<16x16xi32>
    %c0_i32_47 = arith.constant 0 : i32
    %67 = arith.cmpi slt, %60, %c0_i32_47 : i32
    %68 = vector.broadcast %67 : i1 to vector<16x16xi1>
    %69 = vector.broadcast %68 : vector<16x16xi1> to vector<16x16xi1>
    %70 = arith.xori %66, %69 : vector<16x16xi1>
    %71 = arith.andi %70, %64 : vector<16x16xi1>
    %72 = vector.broadcast %60 : i32 to vector<16x16xi32>
    %73 = arith.addi %62, %72 : vector<16x16xi32>
    %74 = arith.select %71, %73, %62 : vector<16x16xi1>, vector<16x16xi32>
    %75 = arith.cmpi eq, %57, %74 : vector<16x16xi32>
    %cst_48 = arith.constant 0.000000e+00 : f32
    %cst_49 = arith.constant -1.000000e+30 : f32
    %76 = vector.broadcast %cst_48 : f32 to vector<16x16xf32>
    %77 = vector.broadcast %cst_49 : f32 to vector<16x16xf32>
    %78 = arith.select %75, %76, %77 : vector<16x16xi1>, vector<16x16xf32>
    %79 = tpu.iota {dimensions = array<i32: 0>} : vector<16x16xi32>
    %c2_i32_50 = arith.constant 2 : i32
    %c0_i32_51 = arith.constant 0 : i32
    %80 = arith.cmpi eq, %c2_i32_50, %c0_i32_51 : i32
    %c1_i32_52 = arith.constant 1 : i32
    %81 = arith.select %80, %c1_i32_52, %c2_i32_50 : i32
    %82 = vector.broadcast %81 : i32 to vector<16x16xi32>
    %83 = arith.remsi %79, %82 : vector<16x16xi32>
    %c0_i32_53 = arith.constant 0 : i32
    %84 = vector.broadcast %c0_i32_53 : i32 to vector<16x16xi32>
    %85 = arith.cmpi ne, %83, %84 : vector<16x16xi32>
    %c0_i32_54 = arith.constant 0 : i32
    %86 = vector.broadcast %c0_i32_54 : i32 to vector<16x16xi32>
    %87 = arith.cmpi slt, %83, %86 : vector<16x16xi32>
    %c0_i32_55 = arith.constant 0 : i32
    %88 = arith.cmpi slt, %81, %c0_i32_55 : i32
    %89 = vector.broadcast %88 : i1 to vector<16x16xi1>
    %90 = vector.broadcast %89 : vector<16x16xi1> to vector<16x16xi1>
    %91 = arith.xori %87, %90 : vector<16x16xi1>
    %92 = arith.andi %91, %85 : vector<16x16xi1>
    %93 = vector.broadcast %81 : i32 to vector<16x16xi32>
    %94 = arith.addi %83, %93 : vector<16x16xi32>
    %95 = arith.select %92, %94, %83 : vector<16x16xi1>, vector<16x16xi32>
    %96 = tpu.iota {dimensions = array<i32: 1>} : vector<16x16xi32>
    %c2_i32_56 = arith.constant 2 : i32
    %c0_i32_57 = arith.constant 0 : i32
    %97 = arith.cmpi eq, %c2_i32_56, %c0_i32_57 : i32
    %c1_i32_58 = arith.constant 1 : i32
    %98 = arith.select %97, %c1_i32_58, %c2_i32_56 : i32
    %99 = vector.broadcast %98 : i32 to vector<16x16xi32>
    %100 = arith.remsi %96, %99 : vector<16x16xi32>
    %c0_i32_59 = arith.constant 0 : i32
    %101 = vector.broadcast %c0_i32_59 : i32 to vector<16x16xi32>
    %102 = arith.cmpi ne, %100, %101 : vector<16x16xi32>
    %c0_i32_60 = arith.constant 0 : i32
    %103 = vector.broadcast %c0_i32_60 : i32 to vector<16x16xi32>
    %104 = arith.cmpi slt, %100, %103 : vector<16x16xi32>
    %c0_i32_61 = arith.constant 0 : i32
    %105 = arith.cmpi slt, %98, %c0_i32_61 : i32
    %106 = vector.broadcast %105 : i1 to vector<16x16xi1>
    %107 = vector.broadcast %106 : vector<16x16xi1> to vector<16x16xi1>
    %108 = arith.xori %104, %107 : vector<16x16xi1>
    %109 = arith.andi %108, %102 : vector<16x16xi1>
    %110 = vector.broadcast %98 : i32 to vector<16x16xi32>
    %111 = arith.addi %100, %110 : vector<16x16xi32>
    %112 = arith.select %109, %111, %100 : vector<16x16xi1>, vector<16x16xi32>
    %113 = arith.cmpi eq, %95, %112 : vector<16x16xi32>
    %cst_62 = arith.constant 0.000000e+00 : f32
    %cst_63 = arith.constant -1.000000e+30 : f32
    %114 = vector.broadcast %cst_62 : f32 to vector<16x16xf32>
    %115 = vector.broadcast %cst_63 : f32 to vector<16x16xf32>
    %116 = arith.select %113, %114, %115 : vector<16x16xi1>, vector<16x16xf32>
    %cst_64 = arith.constant 0.353553385 : f32
    %117 = vector.broadcast %cst_64 : f32 to vector<16x32xf32>
    %118 = arith.mulf %24, %117 : vector<16x32xf32>
    %119 = arith.truncf %118 : vector<16x32xf32> to vector<16x32xbf16>
    %120 = arith.truncf %28 : vector<16x32xf32> to vector<16x32xbf16>
    %121 = arith.truncf %32 : vector<16x32xf32> to vector<16x32xbf16>
    %122 = vector.extract_strided_slice %119 {offsets = [0, 0], sizes = [16, 8], strides = [1, 1]} : vector<16x32xbf16> to vector<16x8xbf16>
    %123 = vector.extract_strided_slice %120 {offsets = [0, 0], sizes = [16, 8], strides = [1, 1]} : vector<16x32xbf16> to vector<16x8xbf16>
    %cst_65 = arith.constant dense<0.000000e+00> : vector<16x16xf32>
    %124 = tpu.matmul %122, %123, %cst_65 {dimension_numbers = #tpu.dot_dimension_numbers<[1], [1], [0], [0], [0, 0, 1, 0], [], []>} : vector<16x8xbf16>, vector<16x8xbf16>, vector<16x16xf32> -> vector<16x16xf32>
    %125 = arith.addf %124, %78 : vector<16x16xf32>
    %cst_66 = arith.constant dense<0xFF800000> : vector<16xf32>
    %126 = vector.multi_reduction <maximumf>, %125, %cst_66 [1] : vector<16x16xf32> to vector<16xf32>
    %127 = vector.shape_cast %126 : vector<16xf32> to vector<16x1xf32>
    %128 = vector.broadcast %127 : vector<16x1xf32> to vector<16x16xf32>
    %129 = arith.subf %125, %128 : vector<16x16xf32>
    %130 = math.exp %129 : vector<16x16xf32>
    %cst_67 = arith.constant dense<0.000000e+00> : vector<16xf32>
    %131 = vector.multi_reduction <add>, %130, %cst_67 [1] : vector<16x16xf32> to vector<16xf32>
    %132 = vector.shape_cast %131 : vector<16xf32> to vector<16x1xf32>
    %133 = vector.broadcast %132 : vector<16x1xf32> to vector<16x16xf32>
    %134 = arith.divf %130, %133 : vector<16x16xf32>
    %135 = arith.truncf %134 : vector<16x16xf32> to vector<16x16xbf16>
    %136 = vector.extract_strided_slice %121 {offsets = [0, 0], sizes = [16, 8], strides = [1, 1]} : vector<16x32xbf16> to vector<16x8xbf16>
    %cst_68 = arith.constant dense<0.000000e+00> : vector<16x8xf32>
    %137 = tpu.matmul %135, %136, %cst_68 {dimension_numbers = #tpu.dot_dimension_numbers<[1], [0], [0], [1], [0, 0, 1, 1], [], []>} : vector<16x16xbf16>, vector<16x8xbf16>, vector<16x8xf32> -> vector<16x8xf32>
    %138 = vector.extract_strided_slice %119 {offsets = [0, 8], sizes = [16, 8], strides = [1, 1]} : vector<16x32xbf16> to vector<16x8xbf16>
    %139 = vector.extract_strided_slice %120 {offsets = [0, 8], sizes = [16, 8], strides = [1, 1]} : vector<16x32xbf16> to vector<16x8xbf16>
    %cst_69 = arith.constant dense<0.000000e+00> : vector<16x16xf32>
    %140 = tpu.matmul %138, %139, %cst_69 {dimension_numbers = #tpu.dot_dimension_numbers<[1], [1], [0], [0], [0, 0, 1, 0], [], []>} : vector<16x8xbf16>, vector<16x8xbf16>, vector<16x16xf32> -> vector<16x16xf32>
    %141 = arith.addf %140, %78 : vector<16x16xf32>
    %cst_70 = arith.constant dense<0xFF800000> : vector<16xf32>
    %142 = vector.multi_reduction <maximumf>, %141, %cst_70 [1] : vector<16x16xf32> to vector<16xf32>
    %143 = vector.shape_cast %142 : vector<16xf32> to vector<16x1xf32>
    %144 = vector.broadcast %143 : vector<16x1xf32> to vector<16x16xf32>
    %145 = arith.subf %141, %144 : vector<16x16xf32>
    %146 = math.exp %145 : vector<16x16xf32>
    %cst_71 = arith.constant dense<0.000000e+00> : vector<16xf32>
    %147 = vector.multi_reduction <add>, %146, %cst_71 [1] : vector<16x16xf32> to vector<16xf32>
    %148 = vector.shape_cast %147 : vector<16xf32> to vector<16x1xf32>
    %149 = vector.broadcast %148 : vector<16x1xf32> to vector<16x16xf32>
    %150 = arith.divf %146, %149 : vector<16x16xf32>
    %151 = arith.truncf %150 : vector<16x16xf32> to vector<16x16xbf16>
    %152 = vector.extract_strided_slice %121 {offsets = [0, 8], sizes = [16, 8], strides = [1, 1]} : vector<16x32xbf16> to vector<16x8xbf16>
    %cst_72 = arith.constant dense<0.000000e+00> : vector<16x8xf32>
    %153 = tpu.matmul %151, %152, %cst_72 {dimension_numbers = #tpu.dot_dimension_numbers<[1], [0], [0], [1], [0, 0, 1, 1], [], []>} : vector<16x16xbf16>, vector<16x8xbf16>, vector<16x8xf32> -> vector<16x8xf32>
    %154 = vector.extract_strided_slice %119 {offsets = [0, 16], sizes = [16, 8], strides = [1, 1]} : vector<16x32xbf16> to vector<16x8xbf16>
    %155 = vector.extract_strided_slice %120 {offsets = [0, 16], sizes = [16, 8], strides = [1, 1]} : vector<16x32xbf16> to vector<16x8xbf16>
    %cst_73 = arith.constant dense<0.000000e+00> : vector<16x16xf32>
    %156 = tpu.matmul %154, %155, %cst_73 {dimension_numbers = #tpu.dot_dimension_numbers<[1], [1], [0], [0], [0, 0, 1, 0], [], []>} : vector<16x8xbf16>, vector<16x8xbf16>, vector<16x16xf32> -> vector<16x16xf32>
    %157 = arith.addf %156, %78 : vector<16x16xf32>
    %cst_74 = arith.constant dense<0xFF800000> : vector<16xf32>
    %158 = vector.multi_reduction <maximumf>, %157, %cst_74 [1] : vector<16x16xf32> to vector<16xf32>
    %159 = vector.shape_cast %158 : vector<16xf32> to vector<16x1xf32>
    %160 = vector.broadcast %159 : vector<16x1xf32> to vector<16x16xf32>
    %161 = arith.subf %157, %160 : vector<16x16xf32>
    %162 = math.exp %161 : vector<16x16xf32>
    %cst_75 = arith.constant dense<0.000000e+00> : vector<16xf32>
    %163 = vector.multi_reduction <add>, %162, %cst_75 [1] : vector<16x16xf32> to vector<16xf32>
    %164 = vector.shape_cast %163 : vector<16xf32> to vector<16x1xf32>
    %165 = vector.broadcast %164 : vector<16x1xf32> to vector<16x16xf32>
    %166 = arith.divf %162, %165 : vector<16x16xf32>
    %167 = arith.truncf %166 : vector<16x16xf32> to vector<16x16xbf16>
    %168 = vector.extract_strided_slice %121 {offsets = [0, 16], sizes = [16, 8], strides = [1, 1]} : vector<16x32xbf16> to vector<16x8xbf16>
    %cst_76 = arith.constant dense<0.000000e+00> : vector<16x8xf32>
    %169 = tpu.matmul %167, %168, %cst_76 {dimension_numbers = #tpu.dot_dimension_numbers<[1], [0], [0], [1], [0, 0, 1, 1], [], []>} : vector<16x16xbf16>, vector<16x8xbf16>, vector<16x8xf32> -> vector<16x8xf32>
    %170 = vector.extract_strided_slice %119 {offsets = [0, 24], sizes = [16, 8], strides = [1, 1]} : vector<16x32xbf16> to vector<16x8xbf16>
    %171 = vector.extract_strided_slice %120 {offsets = [0, 24], sizes = [16, 8], strides = [1, 1]} : vector<16x32xbf16> to vector<16x8xbf16>
    %cst_77 = arith.constant dense<0.000000e+00> : vector<16x16xf32>
    %172 = tpu.matmul %170, %171, %cst_77 {dimension_numbers = #tpu.dot_dimension_numbers<[1], [1], [0], [0], [0, 0, 1, 0], [], []>} : vector<16x8xbf16>, vector<16x8xbf16>, vector<16x16xf32> -> vector<16x16xf32>
    %173 = arith.addf %172, %78 : vector<16x16xf32>
    %cst_78 = arith.constant dense<0xFF800000> : vector<16xf32>
    %174 = vector.multi_reduction <maximumf>, %173, %cst_78 [1] : vector<16x16xf32> to vector<16xf32>
    %175 = vector.shape_cast %174 : vector<16xf32> to vector<16x1xf32>
    %176 = vector.broadcast %175 : vector<16x1xf32> to vector<16x16xf32>
    %177 = arith.subf %173, %176 : vector<16x16xf32>
    %178 = math.exp %177 : vector<16x16xf32>
    %cst_79 = arith.constant dense<0.000000e+00> : vector<16xf32>
    %179 = vector.multi_reduction <add>, %178, %cst_79 [1] : vector<16x16xf32> to vector<16xf32>
    %180 = vector.shape_cast %179 : vector<16xf32> to vector<16x1xf32>
    %181 = vector.broadcast %180 : vector<16x1xf32> to vector<16x16xf32>
    %182 = arith.divf %178, %181 : vector<16x16xf32>
    %183 = arith.truncf %182 : vector<16x16xf32> to vector<16x16xbf16>
    %184 = vector.extract_strided_slice %121 {offsets = [0, 24], sizes = [16, 8], strides = [1, 1]} : vector<16x32xbf16> to vector<16x8xbf16>
    %cst_80 = arith.constant dense<0.000000e+00> : vector<16x8xf32>
    %185 = tpu.matmul %183, %184, %cst_80 {dimension_numbers = #tpu.dot_dimension_numbers<[1], [0], [0], [1], [0, 0, 1, 1], [], []>} : vector<16x16xbf16>, vector<16x8xbf16>, vector<16x8xf32> -> vector<16x8xf32>
    %186 = tpu.concatenate %137, %153, %169, %185 in 1 : vector<16x8xf32>, vector<16x8xf32>, vector<16x8xf32>, vector<16x8xf32> -> vector<16x32xf32>
    %187 = arith.truncf %186 : vector<16x32xf32> to vector<16x32xbf16>
    %cst_81 = arith.constant dense<0.000000e+00> : vector<16x32xf32>
    %188 = tpu.matmul %187, %6, %cst_81 {dimension_numbers = #tpu.dot_dimension_numbers<[1], [1], [0], [0], [0, 0, 1, 0], [], []>} : vector<16x32xbf16>, vector<32x32xbf16>, vector<16x32xf32> -> vector<16x32xf32>
    %189 = vector.broadcast %7 : vector<1x32xf32> to vector<16x32xf32>
    %190 = arith.addf %188, %189 : vector<16x32xf32>
    %191 = arith.addf %12, %190 : vector<16x32xf32>
    %cst_82 = arith.constant dense<0.000000e+00> : vector<16xf32>
    %192 = vector.multi_reduction <add>, %191, %cst_82 [1] : vector<16x32xf32> to vector<16xf32>
    %193 = vector.shape_cast %192 : vector<16xf32> to vector<16x1xf32>
    %cst_83 = arith.constant 3.200000e+01 : f32
    %194 = vector.broadcast %cst_83 : f32 to vector<16x1xf32>
    %195 = arith.divf %193, %194 : vector<16x1xf32>
    %196 = vector.broadcast %195 : vector<16x1xf32> to vector<16x32xf32>
    %197 = arith.subf %191, %196 : vector<16x32xf32>
    %198 = arith.mulf %197, %197 : vector<16x32xf32>
    %cst_84 = arith.constant dense<0.000000e+00> : vector<16xf32>
    %199 = vector.multi_reduction <add>, %198, %cst_84 [1] : vector<16x32xf32> to vector<16xf32>
    %200 = vector.shape_cast %199 : vector<16xf32> to vector<16x1xf32>
    %cst_85 = arith.constant 3.200000e+01 : f32
    %201 = vector.broadcast %cst_85 : f32 to vector<16x1xf32>
    %202 = arith.divf %200, %201 : vector<16x1xf32>
    %cst_86 = arith.constant 9.99999974E-6 : f32
    %203 = vector.broadcast %cst_86 : f32 to vector<16x1xf32>
    %204 = arith.addf %202, %203 : vector<16x1xf32>
    %205 = math.rsqrt %204 : vector<16x1xf32>
    %206 = vector.broadcast %205 : vector<16x1xf32> to vector<16x32xf32>
    %207 = arith.mulf %197, %206 : vector<16x32xf32>
    %c0_87 = arith.constant 0 : index
    %c0_88 = arith.constant 0 : index
    %208 = vector.load %arg18[%c0_87, %c0_88] : memref<1x32xf32, #tpu.memory_space<vmem>>, vector<1x32xf32>
    %209 = vector.broadcast %208 : vector<1x32xf32> to vector<16x32xf32>
    %210 = arith.mulf %207, %209 : vector<16x32xf32>
    %c0_89 = arith.constant 0 : index
    %c0_90 = arith.constant 0 : index
    %211 = vector.load %arg19[%c0_89, %c0_90] : memref<1x32xf32, #tpu.memory_space<vmem>>, vector<1x32xf32>
    %212 = vector.broadcast %211 : vector<1x32xf32> to vector<16x32xf32>
    %213 = arith.addf %210, %212 : vector<16x32xf32>
    %214 = arith.truncf %213 : vector<16x32xf32> to vector<16x32xbf16>
    %cst_91 = arith.constant dense<0.000000e+00> : vector<16x32xf32>
    %215 = tpu.matmul %214, %0, %cst_91 {dimension_numbers = #tpu.dot_dimension_numbers<[1], [1], [0], [0], [0, 0, 1, 0], [], []>} : vector<16x32xbf16>, vector<32x32xbf16>, vector<16x32xf32> -> vector<16x32xf32>
    %216 = vector.broadcast %3 : vector<1x32xf32> to vector<16x32xf32>
    %217 = arith.addf %215, %216 : vector<16x32xf32>
    %cst_92 = arith.constant 0.353553385 : f32
    %218 = vector.broadcast %cst_92 : f32 to vector<16x32xf32>
    %219 = arith.mulf %217, %218 : vector<16x32xf32>
    %220 = arith.truncf %219 : vector<16x32xf32> to vector<16x32xbf16>
    %221 = arith.truncf %36 : vector<16x32xf32> to vector<16x32xbf16>
    %222 = arith.truncf %40 : vector<16x32xf32> to vector<16x32xbf16>
    %223 = vector.extract_strided_slice %220 {offsets = [0, 0], sizes = [16, 8], strides = [1, 1]} : vector<16x32xbf16> to vector<16x8xbf16>
    %224 = vector.extract_strided_slice %221 {offsets = [0, 0], sizes = [16, 8], strides = [1, 1]} : vector<16x32xbf16> to vector<16x8xbf16>
    %cst_93 = arith.constant dense<0.000000e+00> : vector<16x16xf32>
    %225 = tpu.matmul %223, %224, %cst_93 {dimension_numbers = #tpu.dot_dimension_numbers<[1], [1], [0], [0], [0, 0, 1, 0], [], []>} : vector<16x8xbf16>, vector<16x8xbf16>, vector<16x16xf32> -> vector<16x16xf32>
    %226 = arith.addf %225, %116 : vector<16x16xf32>
    %cst_94 = arith.constant dense<0xFF800000> : vector<16xf32>
    %227 = vector.multi_reduction <maximumf>, %226, %cst_94 [1] : vector<16x16xf32> to vector<16xf32>
    %228 = vector.shape_cast %227 : vector<16xf32> to vector<16x1xf32>
    %229 = vector.broadcast %228 : vector<16x1xf32> to vector<16x16xf32>
    %230 = arith.subf %226, %229 : vector<16x16xf32>
    %231 = math.exp %230 : vector<16x16xf32>
    %cst_95 = arith.constant dense<0.000000e+00> : vector<16xf32>
    %232 = vector.multi_reduction <add>, %231, %cst_95 [1] : vector<16x16xf32> to vector<16xf32>
    %233 = vector.shape_cast %232 : vector<16xf32> to vector<16x1xf32>
    %234 = vector.broadcast %233 : vector<16x1xf32> to vector<16x16xf32>
    %235 = arith.divf %231, %234 : vector<16x16xf32>
    %236 = arith.truncf %235 : vector<16x16xf32> to vector<16x16xbf16>
    %237 = vector.extract_strided_slice %222 {offsets = [0, 0], sizes = [16, 8], strides = [1, 1]} : vector<16x32xbf16> to vector<16x8xbf16>
    %cst_96 = arith.constant dense<0.000000e+00> : vector<16x8xf32>
    %238 = tpu.matmul %236, %237, %cst_96 {dimension_numbers = #tpu.dot_dimension_numbers<[1], [0], [0], [1], [0, 0, 1, 1], [], []>} : vector<16x16xbf16>, vector<16x8xbf16>, vector<16x8xf32> -> vector<16x8xf32>
    %239 = vector.extract_strided_slice %220 {offsets = [0, 8], sizes = [16, 8], strides = [1, 1]} : vector<16x32xbf16> to vector<16x8xbf16>
    %240 = vector.extract_strided_slice %221 {offsets = [0, 8], sizes = [16, 8], strides = [1, 1]} : vector<16x32xbf16> to vector<16x8xbf16>
    %cst_97 = arith.constant dense<0.000000e+00> : vector<16x16xf32>
    %241 = tpu.matmul %239, %240, %cst_97 {dimension_numbers = #tpu.dot_dimension_numbers<[1], [1], [0], [0], [0, 0, 1, 0], [], []>} : vector<16x8xbf16>, vector<16x8xbf16>, vector<16x16xf32> -> vector<16x16xf32>
    %242 = arith.addf %241, %116 : vector<16x16xf32>
    %cst_98 = arith.constant dense<0xFF800000> : vector<16xf32>
    %243 = vector.multi_reduction <maximumf>, %242, %cst_98 [1] : vector<16x16xf32> to vector<16xf32>
    %244 = vector.shape_cast %243 : vector<16xf32> to vector<16x1xf32>
    %245 = vector.broadcast %244 : vector<16x1xf32> to vector<16x16xf32>
    %246 = arith.subf %242, %245 : vector<16x16xf32>
    %247 = math.exp %246 : vector<16x16xf32>
    %cst_99 = arith.constant dense<0.000000e+00> : vector<16xf32>
    %248 = vector.multi_reduction <add>, %247, %cst_99 [1] : vector<16x16xf32> to vector<16xf32>
    %249 = vector.shape_cast %248 : vector<16xf32> to vector<16x1xf32>
    %250 = vector.broadcast %249 : vector<16x1xf32> to vector<16x16xf32>
    %251 = arith.divf %247, %250 : vector<16x16xf32>
    %252 = arith.truncf %251 : vector<16x16xf32> to vector<16x16xbf16>
    %253 = vector.extract_strided_slice %222 {offsets = [0, 8], sizes = [16, 8], strides = [1, 1]} : vector<16x32xbf16> to vector<16x8xbf16>
    %cst_100 = arith.constant dense<0.000000e+00> : vector<16x8xf32>
    %254 = tpu.matmul %252, %253, %cst_100 {dimension_numbers = #tpu.dot_dimension_numbers<[1], [0], [0], [1], [0, 0, 1, 1], [], []>} : vector<16x16xbf16>, vector<16x8xbf16>, vector<16x8xf32> -> vector<16x8xf32>
    %255 = vector.extract_strided_slice %220 {offsets = [0, 16], sizes = [16, 8], strides = [1, 1]} : vector<16x32xbf16> to vector<16x8xbf16>
    %256 = vector.extract_strided_slice %221 {offsets = [0, 16], sizes = [16, 8], strides = [1, 1]} : vector<16x32xbf16> to vector<16x8xbf16>
    %cst_101 = arith.constant dense<0.000000e+00> : vector<16x16xf32>
    %257 = tpu.matmul %255, %256, %cst_101 {dimension_numbers = #tpu.dot_dimension_numbers<[1], [1], [0], [0], [0, 0, 1, 0], [], []>} : vector<16x8xbf16>, vector<16x8xbf16>, vector<16x16xf32> -> vector<16x16xf32>
    %258 = arith.addf %257, %116 : vector<16x16xf32>
    %cst_102 = arith.constant dense<0xFF800000> : vector<16xf32>
    %259 = vector.multi_reduction <maximumf>, %258, %cst_102 [1] : vector<16x16xf32> to vector<16xf32>
    %260 = vector.shape_cast %259 : vector<16xf32> to vector<16x1xf32>
    %261 = vector.broadcast %260 : vector<16x1xf32> to vector<16x16xf32>
    %262 = arith.subf %258, %261 : vector<16x16xf32>
    %263 = math.exp %262 : vector<16x16xf32>
    %cst_103 = arith.constant dense<0.000000e+00> : vector<16xf32>
    %264 = vector.multi_reduction <add>, %263, %cst_103 [1] : vector<16x16xf32> to vector<16xf32>
    %265 = vector.shape_cast %264 : vector<16xf32> to vector<16x1xf32>
    %266 = vector.broadcast %265 : vector<16x1xf32> to vector<16x16xf32>
    %267 = arith.divf %263, %266 : vector<16x16xf32>
    %268 = arith.truncf %267 : vector<16x16xf32> to vector<16x16xbf16>
    %269 = vector.extract_strided_slice %222 {offsets = [0, 16], sizes = [16, 8], strides = [1, 1]} : vector<16x32xbf16> to vector<16x8xbf16>
    %cst_104 = arith.constant dense<0.000000e+00> : vector<16x8xf32>
    %270 = tpu.matmul %268, %269, %cst_104 {dimension_numbers = #tpu.dot_dimension_numbers<[1], [0], [0], [1], [0, 0, 1, 1], [], []>} : vector<16x16xbf16>, vector<16x8xbf16>, vector<16x8xf32> -> vector<16x8xf32>
    %271 = vector.extract_strided_slice %220 {offsets = [0, 24], sizes = [16, 8], strides = [1, 1]} : vector<16x32xbf16> to vector<16x8xbf16>
    %272 = vector.extract_strided_slice %221 {offsets = [0, 24], sizes = [16, 8], strides = [1, 1]} : vector<16x32xbf16> to vector<16x8xbf16>
    %cst_105 = arith.constant dense<0.000000e+00> : vector<16x16xf32>
    %273 = tpu.matmul %271, %272, %cst_105 {dimension_numbers = #tpu.dot_dimension_numbers<[1], [1], [0], [0], [0, 0, 1, 0], [], []>} : vector<16x8xbf16>, vector<16x8xbf16>, vector<16x16xf32> -> vector<16x16xf32>
    %274 = arith.addf %273, %116 : vector<16x16xf32>
    %cst_106 = arith.constant dense<0xFF800000> : vector<16xf32>
    %275 = vector.multi_reduction <maximumf>, %274, %cst_106 [1] : vector<16x16xf32> to vector<16xf32>
    %276 = vector.shape_cast %275 : vector<16xf32> to vector<16x1xf32>
    %277 = vector.broadcast %276 : vector<16x1xf32> to vector<16x16xf32>
    %278 = arith.subf %274, %277 : vector<16x16xf32>
    %279 = math.exp %278 : vector<16x16xf32>
    %cst_107 = arith.constant dense<0.000000e+00> : vector<16xf32>
    %280 = vector.multi_reduction <add>, %279, %cst_107 [1] : vector<16x16xf32> to vector<16xf32>
    %281 = vector.shape_cast %280 : vector<16xf32> to vector<16x1xf32>
    %282 = vector.broadcast %281 : vector<16x1xf32> to vector<16x16xf32>
    %283 = arith.divf %279, %282 : vector<16x16xf32>
    %284 = arith.truncf %283 : vector<16x16xf32> to vector<16x16xbf16>
    %285 = vector.extract_strided_slice %222 {offsets = [0, 24], sizes = [16, 8], strides = [1, 1]} : vector<16x32xbf16> to vector<16x8xbf16>
    %cst_108 = arith.constant dense<0.000000e+00> : vector<16x8xf32>
    %286 = tpu.matmul %284, %285, %cst_108 {dimension_numbers = #tpu.dot_dimension_numbers<[1], [0], [0], [1], [0, 0, 1, 1], [], []>} : vector<16x16xbf16>, vector<16x8xbf16>, vector<16x8xf32> -> vector<16x8xf32>
    %287 = tpu.concatenate %238, %254, %270, %286 in 1 : vector<16x8xf32>, vector<16x8xf32>, vector<16x8xf32>, vector<16x8xf32> -> vector<16x32xf32>
    %288 = arith.truncf %287 : vector<16x32xf32> to vector<16x32xbf16>
    %cst_109 = arith.constant dense<0.000000e+00> : vector<16x32xf32>
    %289 = tpu.matmul %288, %6, %cst_109 {dimension_numbers = #tpu.dot_dimension_numbers<[1], [1], [0], [0], [0, 0, 1, 0], [], []>} : vector<16x32xbf16>, vector<32x32xbf16>, vector<16x32xf32> -> vector<16x32xf32>
    %290 = vector.broadcast %7 : vector<1x32xf32> to vector<16x32xf32>
    %291 = arith.addf %289, %290 : vector<16x32xf32>
    %292 = arith.addf %12, %291 : vector<16x32xf32>
    %cst_110 = arith.constant dense<0.000000e+00> : vector<16xf32>
    %293 = vector.multi_reduction <add>, %292, %cst_110 [1] : vector<16x32xf32> to vector<16xf32>
    %294 = vector.shape_cast %293 : vector<16xf32> to vector<16x1xf32>
    %cst_111 = arith.constant 3.200000e+01 : f32
    %295 = vector.broadcast %cst_111 : f32 to vector<16x1xf32>
    %296 = arith.divf %294, %295 : vector<16x1xf32>
    %297 = vector.broadcast %296 : vector<16x1xf32> to vector<16x32xf32>
    %298 = arith.subf %292, %297 : vector<16x32xf32>
    %299 = arith.mulf %298, %298 : vector<16x32xf32>
    %cst_112 = arith.constant dense<0.000000e+00> : vector<16xf32>
    %300 = vector.multi_reduction <add>, %299, %cst_112 [1] : vector<16x32xf32> to vector<16xf32>
    %301 = vector.shape_cast %300 : vector<16xf32> to vector<16x1xf32>
    %cst_113 = arith.constant 3.200000e+01 : f32
    %302 = vector.broadcast %cst_113 : f32 to vector<16x1xf32>
    %303 = arith.divf %301, %302 : vector<16x1xf32>
    %cst_114 = arith.constant 9.99999974E-6 : f32
    %304 = vector.broadcast %cst_114 : f32 to vector<16x1xf32>
    %305 = arith.addf %303, %304 : vector<16x1xf32>
    %306 = math.rsqrt %305 : vector<16x1xf32>
    %307 = vector.broadcast %306 : vector<16x1xf32> to vector<16x32xf32>
    %308 = arith.mulf %298, %307 : vector<16x32xf32>
    %c0_115 = arith.constant 0 : index
    %c0_116 = arith.constant 0 : index
    %309 = vector.load %arg20[%c0_115, %c0_116] : memref<1x32xf32, #tpu.memory_space<vmem>>, vector<1x32xf32>
    %310 = vector.broadcast %309 : vector<1x32xf32> to vector<16x32xf32>
    %311 = arith.mulf %308, %310 : vector<16x32xf32>
    %c0_117 = arith.constant 0 : index
    %c0_118 = arith.constant 0 : index
    %312 = vector.load %arg21[%c0_117, %c0_118] : memref<1x32xf32, #tpu.memory_space<vmem>>, vector<1x32xf32>
    %313 = vector.broadcast %312 : vector<1x32xf32> to vector<16x32xf32>
    %314 = arith.addf %311, %313 : vector<16x32xf32>
    %315 = arith.truncf %314 : vector<16x32xf32> to vector<16x32xbf16>
    %cst_119 = arith.constant dense<0.000000e+00> : vector<16x64xf32>
    %316 = tpu.matmul %315, %8, %cst_119 {dimension_numbers = #tpu.dot_dimension_numbers<[1], [1], [0], [0], [0, 0, 1, 0], [], []>} : vector<16x32xbf16>, vector<64x32xbf16>, vector<16x64xf32> -> vector<16x64xf32>
    %317 = vector.broadcast %9 : vector<1x64xf32> to vector<16x64xf32>
    %318 = arith.addf %316, %317 : vector<16x64xf32>
    %cst_120 = arith.constant 0.000000e+00 : f32
    %319 = vector.broadcast %cst_120 : f32 to vector<16x64xf32>
    %320 = arith.maximumf %318, %319 : vector<16x64xf32>
    %321 = arith.truncf %320 : vector<16x64xf32> to vector<16x64xbf16>
    %cst_121 = arith.constant dense<0.000000e+00> : vector<16x32xf32>
    %322 = tpu.matmul %321, %10, %cst_121 {dimension_numbers = #tpu.dot_dimension_numbers<[1], [1], [0], [0], [0, 0, 1, 0], [], []>} : vector<16x64xbf16>, vector<32x64xbf16>, vector<16x32xf32> -> vector<16x32xf32>
    %323 = vector.broadcast %11 : vector<1x32xf32> to vector<16x32xf32>
    %324 = arith.addf %322, %323 : vector<16x32xf32>
    %325 = arith.addf %314, %324 : vector<16x32xf32>
    %cst_122 = arith.constant dense<0.000000e+00> : vector<16xf32>
    %326 = vector.multi_reduction <add>, %325, %cst_122 [1] : vector<16x32xf32> to vector<16xf32>
    %327 = vector.shape_cast %326 : vector<16xf32> to vector<16x1xf32>
    %cst_123 = arith.constant 3.200000e+01 : f32
    %328 = vector.broadcast %cst_123 : f32 to vector<16x1xf32>
    %329 = arith.divf %327, %328 : vector<16x1xf32>
    %330 = vector.broadcast %329 : vector<16x1xf32> to vector<16x32xf32>
    %331 = arith.subf %325, %330 : vector<16x32xf32>
    %332 = arith.mulf %331, %331 : vector<16x32xf32>
    %cst_124 = arith.constant dense<0.000000e+00> : vector<16xf32>
    %333 = vector.multi_reduction <add>, %332, %cst_124 [1] : vector<16x32xf32> to vector<16xf32>
    %334 = vector.shape_cast %333 : vector<16xf32> to vector<16x1xf32>
    %cst_125 = arith.constant 3.200000e+01 : f32
    %335 = vector.broadcast %cst_125 : f32 to vector<16x1xf32>
    %336 = arith.divf %334, %335 : vector<16x1xf32>
    %cst_126 = arith.constant 9.99999974E-6 : f32
    %337 = vector.broadcast %cst_126 : f32 to vector<16x1xf32>
    %338 = arith.addf %336, %337 : vector<16x1xf32>
    %339 = math.rsqrt %338 : vector<16x1xf32>
    %340 = vector.broadcast %339 : vector<16x1xf32> to vector<16x32xf32>
    %341 = arith.mulf %331, %340 : vector<16x32xf32>
    %c0_127 = arith.constant 0 : index
    %c0_128 = arith.constant 0 : index
    %342 = vector.load %arg22[%c0_127, %c0_128] : memref<1x32xf32, #tpu.memory_space<vmem>>, vector<1x32xf32>
    %343 = vector.broadcast %342 : vector<1x32xf32> to vector<16x32xf32>
    %344 = arith.mulf %341, %343 : vector<16x32xf32>
    %c0_129 = arith.constant 0 : index
    %c0_130 = arith.constant 0 : index
    %345 = vector.load %arg23[%c0_129, %c0_130] : memref<1x32xf32, #tpu.memory_space<vmem>>, vector<1x32xf32>
    %346 = vector.broadcast %345 : vector<1x32xf32> to vector<16x32xf32>
    %347 = arith.addf %344, %346 : vector<16x32xf32>
    %c0_131 = arith.constant 0 : index
    %c0_132 = arith.constant 0 : index
    %348 = vector.load %arg24[%c0_131, %c0_132] : memref<16x32xf32, #tpu.memory_space<vmem>>, vector<16x32xf32>
    tpu.vector_store %arg24[%c0_131, %c0_132], %347 {strides = array<i32>} : memref<16x32xf32, #tpu.memory_space<vmem>>, vector<16x32xf32>,
    return
  }
}

</mosaic_0001>

<llo_original>
// kernel: decoder_forward.1
$region0: #{decoder_forward.1}
  #allocation0 [shape = 'u32[]', space=smem, size = 0x4, offset = 0x4, fixed_abs, tag = 'smem constant byte address 0x4 - core index']
  #allocation1 [shape = 'u32[72,128]{1,0:T(1,128)}', space=vmem, size = 0x9000, scoped, tag = 'internal scratch']
  %s0 = inlined_call_operand.vmem [shape: f32[16,32], index: 0, kind: input, shape index: {}]
  %s1 = inlined_call_operand.vmem [shape: f32[16,32], index: 1, kind: input, shape index: {}]
  %s2 = inlined_call_operand.vmem [shape: f32[16,32], index: 2, kind: input, shape index: {}]
  %s3 = inlined_call_operand.vmem [shape: f32[16,32], index: 3, kind: input, shape index: {}]
  %s4 = inlined_call_operand.vmem [shape: f32[16,32], index: 4, kind: input, shape index: {}]
  %s5 = inlined_call_operand.vmem [shape: f32[16,32], index: 5, kind: input, shape index: {}]
  %s6 = inlined_call_operand.vmem [shape: bf16[32,32], index: 6, kind: input, shape index: {}]
  %s7 = inlined_call_operand.vmem [shape: bf16[32,32], index: 7, kind: input, shape index: {}]
  %s8 = inlined_call_operand.vmem [shape: bf16[32,32], index: 8, kind: input, shape index: {}]
  %s9 = inlined_call_operand.vmem [shape: f32[1,32], index: 9, kind: input, shape index: {}]
  %s10 = inlined_call_operand.vmem [shape: f32[1,32], index: 10, kind: input, shape index: {}]
  %s11 = inlined_call_operand.vmem [shape: f32[1,32], index: 11, kind: input, shape index: {}]
  %s12 = inlined_call_operand.vmem [shape: bf16[32,32], index: 12, kind: input, shape index: {}]
  %s13 = inlined_call_operand.vmem [shape: f32[1,32], index: 13, kind: input, shape index: {}]
  %s14 = inlined_call_operand.vmem [shape: bf16[64,32], index: 14, kind: input, shape index: {}]
  %s15 = inlined_call_operand.vmem [shape: f32[1,64], index: 15, kind: input, shape index: {}]
  %s16 = inlined_call_operand.vmem [shape: bf16[32,64], index: 16, kind: input, shape index: {}]
  %s17 = inlined_call_operand.vmem [shape: f32[1,32], index: 17, kind: input, shape index: {}]
  %s18 = inlined_call_operand.vmem [shape: f32[1,32], index: 18, kind: input, shape index: {}]
  %s19 = inlined_call_operand.vmem [shape: f32[1,32], index: 19, kind: input, shape index: {}]
  %s20 = inlined_call_operand.vmem [shape: f32[1,32], index: 20, kind: input, shape index: {}]
  %s21 = inlined_call_operand.vmem [shape: f32[1,32], index: 21, kind: input, shape index: {}]
  %s22 = inlined_call_operand.vmem [shape: f32[1,32], index: 22, kind: input, shape index: {}]
  %s23 = inlined_call_operand.vmem [shape: f32[1,32], index: 23, kind: input, shape index: {}]
  %s24 = inlined_call_operand.hbm [shape: f32[16,32], index: 24, kind: output, shape index: {}]
  %s25 = sld [smem:[#allocation0]]
  $region106: #{decoder_forward.1} parent=0
    _
  %s27 = ssub.s32 1, %s25
  %s28 = scalar_select 0, %s27, %s25
  $region1: #{decoder_forward.1} parent=0
    #allocation2 [shape = 'u8[8192]{0}', space=vmem, size = 0x2000, scoped, tag = 'output window, operand 0, single buffered']
    #allocation3 [shape = 's32[1]{0}', space=sflag, size = 0x4, scoped, tag = 'scoped memory for decoder_forward.1']
    %29 = vsyncpa [#allocation3], 0
    // Predicated region
    $region2: #{decoder_forward.1} parent=1 // pred_check
      _
    $region3: #{decoder_forward.1} parent=1 // pred_check_branch
      %31 = sbr.rel (0) target = $region5
    $region4: #{decoder_forward.1} parent=1 // pred_region
      _
    $region5: #{decoder_forward.1} parent=1 // pred_fallthru
      _
    // Predicated region
    $region6: #{decoder_forward.1} parent=1 // pred_check
      _
    $region7: #{decoder_forward.1} parent=1 // pred_check_branch
      %33 = sbr.rel (0) target = $region9
    $region8: #{decoder_forward.1} parent=1 // pred_region
      _
    $region9: #{decoder_forward.1} parent=1 // pred_fallthru
      _
    // Predicated region
    $region10: #{decoder_forward.1} parent=1 // pred_check
      _
    $region11: #{decoder_forward.1} parent=1 // pred_check_branch
      %35 = sbr.rel (0) target = $region13
    $region12: #{decoder_forward.1} parent=1 // pred_region
      _
    $region13: #{decoder_forward.1} parent=1 // pred_fallthru
      _
    // Predicated region
    $region14: #{decoder_forward.1} parent=1 // pred_check
      _
    $region15: #{decoder_forward.1} parent=1 // pred_check_branch
      %37 = sbr.rel (0) target = $region17
    $region16: #{decoder_forward.1} parent=1 // pred_region
      _
    $region17: #{decoder_forward.1} parent=1 // pred_fallthru
      _
    // Predicated region
    $region18: #{decoder_forward.1} parent=1 // pred_check
      _
    $region19: #{decoder_forward.1} parent=1 // pred_check_branch
      %39 = sbr.rel (0) target = $region21
    $region20: #{decoder_forward.1} parent=1 // pred_region
      _
    $region21: #{decoder_forward.1} parent=1 // pred_fallthru
      _
    // Predicated region
    $region22: #{decoder_forward.1} parent=1 // pred_check
      _
    $region23: #{decoder_forward.1} parent=1 // pred_check_branch
      %41 = sbr.rel (0) target = $region25
    $region24: #{decoder_forward.1} parent=1 // pred_region
      _
    $region25: #{decoder_forward.1} parent=1 // pred_fallthru
      _
    // Predicated region
    $region26: #{decoder_forward.1} parent=1 // pred_check
      _
    $region27: #{decoder_forward.1} parent=1 // pred_check_branch
      %43 = sbr.rel (0) target = $region29
    $region28: #{decoder_forward.1} parent=1 // pred_region
      _
    $region29: #{decoder_forward.1} parent=1 // pred_fallthru
      _
    // Predicated region
    $region30: #{decoder_forward.1} parent=1 // pred_check
      _
    $region31: #{decoder_forward.1} parent=1 // pred_check_branch
      %45 = sbr.rel (0) target = $region33
    $region32: #{decoder_forward.1} parent=1 // pred_region
      _
    $region33: #{decoder_forward.1} parent=1 // pred_fallthru
      _
    // Predicated region
    $region34: #{decoder_forward.1} parent=1 // pred_check
      _
    $region35: #{decoder_forward.1} parent=1 // pred_check_branch
      %47 = sbr.rel (0) target = $region37
    $region36: #{decoder_forward.1} parent=1 // pred_region
      _
    $region37: #{decoder_forward.1} parent=1 // pred_fallthru
      _
    // Predicated region
    $region38: #{decoder_forward.1} parent=1 // pred_check
      _
    $region39: #{decoder_forward.1} parent=1 // pred_check_branch
      %49 = sbr.rel (0) target = $region41
    $region40: #{decoder_forward.1} parent=1 // pred_region
      _
    $region41: #{decoder_forward.1} parent=1 // pred_fallthru
      _
    // Predicated region
    $region42: #{decoder_forward.1} parent=1 // pred_check
      _
    $region43: #{decoder_forward.1} parent=1 // pred_check_branch
      %51 = sbr.rel (0) target = $region45
    $region44: #{decoder_forward.1} parent=1 // pred_region
      _
    $region45: #{decoder_forward.1} parent=1 // pred_fallthru
      _
    // Predicated region
    $region46: #{decoder_forward.1} parent=1 // pred_check
      _
    $region47: #{decoder_forward.1} parent=1 // pred_check_branch
      %53 = sbr.rel (0) target = $region49
    $region48: #{decoder_forward.1} parent=1 // pred_region
      _
    $region49: #{decoder_forward.1} parent=1 // pred_fallthru
      _
    // Predicated region
    $region50: #{decoder_forward.1} parent=1 // pred_check
      _
    $region51: #{decoder_forward.1} parent=1 // pred_check_branch
      %55 = sbr.rel (0) target = $region53
    $region52: #{decoder_forward.1} parent=1 // pred_region
      _
    $region53: #{decoder_forward.1} parent=1 // pred_fallthru
      _
    // Predicated region
    $region54: #{decoder_forward.1} parent=1 // pred_check
      _
    $region55: #{decoder_forward.1} parent=1 // pred_check_branch
      %57 = sbr.rel (0) target = $region57
    $region56: #{decoder_forward.1} parent=1 // pred_region
      _
    $region57: #{decoder_forward.1} parent=1 // pred_fallthru
      _
    // Predicated region
    $region58: #{decoder_forward.1} parent=1 // pred_check
      _
    $region59: #{decoder_forward.1} parent=1 // pred_check_branch
      %59 = sbr.rel (0) target = $region61
    $region60: #{decoder_forward.1} parent=1 // pred_region
      _
    $region61: #{decoder_forward.1} parent=1 // pred_fallthru
      _
    // Predicated region
    $region62: #{decoder_forward.1} parent=1 // pred_check
      _
    $region63: #{decoder_forward.1} parent=1 // pred_check_branch
      %61 = sbr.rel (0) target = $region65
    $region64: #{decoder_forward.1} parent=1 // pred_region
      _
    $region65: #{decoder_forward.1} parent=1 // pred_fallthru
      _
    // Predicated region
    $region66: #{decoder_forward.1} parent=1 // pred_check
      _
    $region67: #{decoder_forward.1} parent=1 // pred_check_branch
      %63 = sbr.rel (0) target = $region69
    $region68: #{decoder_forward.1} parent=1 // pred_region
      _
    $region69: #{decoder_forward.1} parent=1 // pred_fallthru
      _
    // Predicated region
    $region70: #{decoder_forward.1} parent=1 // pred_check
      _
    $region71: #{decoder_forward.1} parent=1 // pred_check_branch
      %65 = sbr.rel (0) target = $region73
    $region72: #{decoder_forward.1} parent=1 // pred_region
      _
    $region73: #{decoder_forward.1} parent=1 // pred_fallthru
      _
    // Predicated region
    $region74: #{decoder_forward.1} parent=1 // pred_check
      _
    $region75: #{decoder_forward.1} parent=1 // pred_check_branch
      %67 = sbr.rel (0) target = $region77
    $region76: #{decoder_forward.1} parent=1 // pred_region
      _
    $region77: #{decoder_forward.1} parent=1 // pred_fallthru
      _
    // Predicated region
    $region78: #{decoder_forward.1} parent=1 // pred_check
      _
    $region79: #{decoder_forward.1} parent=1 // pred_check_branch
      %69 = sbr.rel (0) target = $region81
    $region80: #{decoder_forward.1} parent=1 // pred_region
      _
    $region81: #{decoder_forward.1} parent=1 // pred_fallthru
      _
    // Predicated region
    $region82: #{decoder_forward.1} parent=1 // pred_check
      _
    $region83: #{decoder_forward.1} parent=1 // pred_check_branch
      %71 = sbr.rel (0) target = $region85
    $region84: #{decoder_forward.1} parent=1 // pred_region
      _
    $region85: #{decoder_forward.1} parent=1 // pred_fallthru
      _
    // Predicated region
    $region86: #{decoder_forward.1} parent=1 // pred_check
      _
    $region87: #{decoder_forward.1} parent=1 // pred_check_branch
      %73 = sbr.rel (0) target = $region89
    $region88: #{decoder_forward.1} parent=1 // pred_region
      _
    $region89: #{decoder_forward.1} parent=1 // pred_fallthru
      _
    // Predicated region
    $region90: #{decoder_forward.1} parent=1 // pred_check
      _
    $region91: #{decoder_forward.1} parent=1 // pred_check_branch
      %75 = sbr.rel (0) target = $region93
    $region92: #{decoder_forward.1} parent=1 // pred_region
      _
    $region93: #{decoder_forward.1} parent=1 // pred_fallthru
      _
    // Predicated region
    $region94: #{decoder_forward.1} parent=1 // pred_check
      _
    $region95: #{decoder_forward.1} parent=1 // pred_check_branch
      %77 = sbr.rel (0) target = $region97
    $region96: #{decoder_forward.1} parent=1 // pred_region
      _
    $region97: #{decoder_forward.1} parent=1 // pred_fallthru
      _
    %v79 = vld [vmem:[%s6] sm:$0xf]
    %v80 = vld [vmem:[%s6 + $0x4] sm:$0xf]
    %v81 = vld [vmem:[%s6 + $0x8] sm:$0xf]
    %v82 = vld [vmem:[%s6 + $0xc] sm:$0xf]
    %v83 = vld [vmem:[%s7] sm:$0xf]
    %v84 = vld [vmem:[%s7 + $0x4] sm:$0xf]
    %v85 = vld [vmem:[%s7 + $0x8] sm:$0xf]
    %v86 = vld [vmem:[%s7 + $0xc] sm:$0xf]
    %v87 = vld [vmem:[%s8] sm:$0xf]
    %v88 = vld [vmem:[%s8 + $0x4] sm:$0xf]
    %v89 = vld [vmem:[%s8 + $0x8] sm:$0xf]
    %v90 = vld [vmem:[%s8 + $0xc] sm:$0xf]
    %v91 = vld [vmem:[%s9] sm:$0x1]
    %v92 = vld [vmem:[%s10] sm:$0x1]
    %v93 = vld [vmem:[%s11] sm:$0x1]
    %v94 = vld [vmem:[%s12] sm:$0xf]
    %v95 = vld [vmem:[%s12 + $0x4] sm:$0xf]
    %v96 = vld [vmem:[%s12 + $0x8] sm:$0xf]
    %v97 = vld [vmem:[%s12 + $0xc] sm:$0xf]
    %v98 = vld [vmem:[%s13] sm:$0x1]
    %v99 = vld [vmem:[%s14] sm:$0xf]
    %v100 = vld [vmem:[%s14 + $0x4] sm:$0xf]
    %v101 = vld [vmem:[%s14 + $0x8] sm:$0xf]
    %v102 = vld [vmem:[%s14 + $0xc] sm:$0xf]
    %v103 = vld [vmem:[%s14 + $0x10] sm:$0xf]
    %v104 = vld [vmem:[%s14 + $0x14] sm:$0xf]
    %v105 = vld [vmem:[%s14 + $0x18] sm:$0xf]
    %v106 = vld [vmem:[%s14 + $0x1c] sm:$0xf]
    %v107 = vld [vmem:[%s15] sm:$0x1]
    %v108 = vld [vmem:[%s16] sm:$0xf]
    %v109 = vld [vmem:[%s16 + $0x4] sm:$0xf]
    %v110 = vld [vmem:[%s16 + $0x8] sm:$0xf]
    %v111 = vld [vmem:[%s16 + $0xc] sm:$0xf]
    %v112 = vld [vmem:[%s17] sm:$0x1]
    %v113 = vld [vmem:[%s0] sm:$0xff]
    %v114 = vld [vmem:[%s0 + $0x8] sm:$0xff]
    %v115 = vld [vmem:[%s2] sm:$0xff]
    %v116 = vld [vmem:[%s2 + $0x8] sm:$0xff]
    %v117 = vld [vmem:[%s4] sm:$0xff]
    %v118 = vld [vmem:[%s4 + $0x8] sm:$0xff]
    %v119 = vld [vmem:[%s1] sm:$0xff]
    %v120 = vld [vmem:[%s1 + $0x8] sm:$0xff]
    %v121 = vadd.f32 %v113, %v119
    %v122 = vadd.f32 %v114, %v120
    %v123 = vld [vmem:[%s3] sm:$0xff]
    %v124 = vld [vmem:[%s3 + $0x8] sm:$0xff]
    %v125 = vadd.f32 %v115, %v123
    %v126 = vadd.f32 %v116, %v124
    %v127 = vld [vmem:[%s5] sm:$0xff]
    %v128 = vld [vmem:[%s5 + $0x8] sm:$0xff]
    %v129 = vadd.f32 %v117, %v127
    %v130 = vadd.f32 %v118, %v128
    %v131 = vpack.c.bf16 %v122, %v121
    %v133 = vperm.slane %v91, 0
    %v139 = vunpack.c.l.b16 %v79
    %v140 = vunpack.c.l.b16 %v80
    %v141 = vunpack.c.l.b16 %v81
    %v142 = vunpack.c.l.b16 %v82
    %v143 = vpack.c.b16 %v140, %v139
    %v144 = vpack.c.b16 %v142, %v141
    %vm145 = vcmask 261120
    %v147 = vsel %vm145, %v131, 0
    %v150 = vsel %vm145, %v143, 0
    %v153 = vsel %vm145, %v144, 0
    %155 = vmatpush.bf16.xpose.msra.mxu0 0
    %156 = vmatpush.bf16.xpose.msra.mxu0 0
    %157 = vmatpush.bf16.xpose.msra.mxu0 0
    %158 = vmatpush.bf16.xpose.msra.mxu0 0
    %159 = vmatpush.bf16.xpose.msra.mxu0 0
    %160 = vmatpush.bf16.xpose.msra.mxu0 0
    %161 = vmatpush.bf16.xpose.msra.mxu0 %v153
    %162 = vmatpush.bf16.xpose.msra.mxu0 %v150
    %163 = vmatmul.bf16.gmra.mxu0 %v147
    %v164 = vpop.f32.mrf.mxu0
    %v165 = vadd.f32 %v133, %v164
    %v166 = vpop.f32.mrf.mxu0
    %v167 = vadd.f32 %v133, %v166
    %168 = vdwg.mxu0
    %v169 = vpack.c.bf16 %v126, %v125
    %v171 = vperm.slane %v92, 0
    %v177 = vunpack.c.l.b16 %v83
    %v178 = vunpack.c.l.b16 %v84
    %v179 = vunpack.c.l.b16 %v85
    %v180 = vunpack.c.l.b16 %v86
    %v181 = vpack.c.b16 %v178, %v177
    %v182 = vpack.c.b16 %v180, %v179
    %v184 = vsel %vm145, %v169, 0
    %v187 = vsel %vm145, %v181, 0
    %v190 = vsel %vm145, %v182, 0
    %192 = vmatpush.bf16.xpose.msra.mxu0 0
    %193 = vmatpush.bf16.xpose.msra.mxu0 0
    %194 = vmatpush.bf16.xpose.msra.mxu0 0
    %195 = vmatpush.bf16.xpose.msra.mxu0 0
    %196 = vmatpush.bf16.xpose.msra.mxu0 0
    %197 = vmatpush.bf16.xpose.msra.mxu0 0
    %198 = vmatpush.bf16.xpose.msra.mxu0 %v190
    %199 = vmatpush.bf16.xpose.msra.mxu0 %v187
    %200 = vmatmul.bf16.gmra.mxu0 %v184
    %v201 = vpop.f32.mrf.mxu0
    %v202 = vadd.f32 %v171, %v201
    %v203 = vpop.f32.mrf.mxu0
    %v204 = vadd.f32 %v171, %v203
    %205 = vdwg.mxu0
    %v206 = vpack.c.bf16 %v116, %v115
    %v208 = vperm.slane %v93, 0
    %v214 = vunpack.c.l.b16 %v87
    %v215 = vunpack.c.l.b16 %v88
    %v216 = vunpack.c.l.b16 %v89
    %v217 = vunpack.c.l.b16 %v90
    %v218 = vpack.c.b16 %v215, %v214
    %v219 = vpack.c.b16 %v217, %v216
    %v221 = vsel %vm145, %v206, 0
    %v224 = vsel %vm145, %v218, 0
    %v227 = vsel %vm145, %v219, 0
    %229 = vmatpush.bf16.xpose.msra.mxu0 0
    %230 = vmatpush.bf16.xpose.msra.mxu0 0
    %231 = vmatpush.bf16.xpose.msra.mxu0 0
    %232 = vmatpush.bf16.xpose.msra.mxu0 0
    %233 = vmatpush.bf16.xpose.msra.mxu0 0
    %234 = vmatpush.bf16.xpose.msra.mxu0 0
    %235 = vmatpush.bf16.xpose.msra.mxu0 %v227
    %236 = vmatpush.bf16.xpose.msra.mxu0 %v224
    %237 = vmatmul.bf16.gmra.mxu0 %v221
    %v238 = vpop.f32.mrf.mxu0
    %v239 = vadd.f32 %v208, %v238
    %v240 = vpop.f32.mrf.mxu0
    %v241 = vadd.f32 %v208, %v240
    %242 = vdwg.mxu0
    %v243 = vpack.c.bf16 %v130, %v129
    %v245 = vsel %vm145, %v243, 0
    %247 = vmatpush.bf16.xpose.msra.mxu0 0
    %248 = vmatpush.bf16.xpose.msra.mxu0 0
    %249 = vmatpush.bf16.xpose.msra.mxu0 0
    %250 = vmatpush.bf16.xpose.msra.mxu0 0
    %251 = vmatpush.bf16.xpose.msra.mxu0 0
    %252 = vmatpush.bf16.xpose.msra.mxu0 0
    %253 = vmatpush.bf16.xpose.msra.mxu0 %v190
    %254 = vmatpush.bf16.xpose.msra.mxu0 %v187
    %255 = vmatmul.bf16.gmra.mxu0 %v245
    %v256 = vpop.f32.mrf.mxu0
    %v257 = vadd.f32 %v171, %v256
    %v258 = vpop.f32.mrf.mxu0
    %v259 = vadd.f32 %v171, %v258
    %260 = vdwg.mxu0
    %v261 = vpack.c.bf16 %v118, %v117
    %v263 = vsel %vm145, %v261, 0
    %265 = vmatpush.bf16.xpose.msra.mxu0 0
    %266 = vmatpush.bf16.xpose.msra.mxu0 0
    %267 = vmatpush.bf16.xpose.msra.mxu0 0
    %268 = vmatpush.bf16.xpose.msra.mxu0 0
    %269 = vmatpush.bf16.xpose.msra.mxu0 0
    %270 = vmatpush.bf16.xpose.msra.mxu0 0
    %271 = vmatpush.bf16.xpose.msra.mxu0 %v227
    %272 = vmatpush.bf16.xpose.msra.mxu0 %v224
    %273 = vmatmul.bf16.gmra.mxu0 %v263
    %v274 = vpop.f32.mrf.mxu0
    %v275 = vadd.f32 %v208, %v274
    %v276 = vpop.f32.mrf.mxu0
    %v277 = vadd.f32 %v208, %v276
    %278 = vdwg.mxu0
    %v279 = vlaneseq
    %v280 = vshrl.u32 %v279, 7
    %v281 = vadd.s32 %v280, 8
    %vm282 = vcmp.lt.s32.totalorder %v280, 0
    %v283 = vsub.s32 0, %v280
    %v284 = vsel %vm282, %v283, %v280
    %v285 = vshrl.u32 %v284, 1
    %v286 = vand.u32 %v284, 1
    %v287 = vsub.s32 0, %v286
    %v288 = vsel %vm282, %v287, %v286
    %vm289 = vcmp.lt.s32.totalorder %v281, 0
    %v290 = vsub.s32 0, %v281
    %v291 = vsel %vm289, %v290, %v281
    %v292 = vshrl.u32 %v291, 1
    %v293 = vand.u32 %v291, 1
    %v294 = vsub.s32 0, %v293
    %v295 = vsel %vm289, %v294, %v293
    %vm296 = vcmp.ne.s32.totalorder %v288, 0
    %vm297 = vcmp.ne.s32.totalorder %v295, 0
    %vm298 = vcmp.lt.s32.totalorder %v288, 0
    %vm299 = vcmp.lt.s32.totalorder %v295, 0
    %vm300 = vmand %vm298, %vm296
    %vm301 = vmand %vm299, %vm297
    %v302 = vadd.s32 %v288, 2
    %v303 = vadd.s32 %v295, 2
    %v304 = vsel %vm300, %v302, %v288
    %v305 = vsel %vm301, %v303, %v295
    %v306 = vlaneseq
    %v307 = vand.u32 %v306, 127
    %vm308 = vcmp.lt.s32.totalorder %v307, 0
    %v309 = vsub.s32 0, %v307
    %v310 = vsel %vm308, %v309, %v307
    %v311 = vshrl.u32 %v310, 1
    %v312 = vand.u32 %v310, 1
    %v313 = vsub.s32 0, %v312
    %v314 = vsel %vm308, %v313, %v312
    %vm315 = vcmp.ne.s32.totalorder %v314, 0
    %vm316 = vcmp.lt.s32.totalorder %v314, 0
    %vm317 = vmand %vm316, %vm315
    %v318 = vadd.s32 %v314, 2
    %v319 = vsel %vm317, %v318, %v314
    %vm320 = vcmp.eq.s32.totalorder %v304, %v319
    %vm321 = vcmp.eq.s32.totalorder %v305, %v319
    %v322 = vsel %vm320, 0.0, -1e+30
    %v323 = vsel %vm321, 0.0, -1e+30
    %v324 = vmul.f32 %v165, 0.35355338
    %v325 = vmul.f32 %v167, 0.35355338
    %v326 = vpack.c.bf16 %v324, %v324
    %v327 = vpack.c.bf16 %v325, %v325
    %v328 = vpack.c.bf16 %v202, %v202
    %v329 = vpack.c.bf16 %v204, %v204
    %v330 = vpack.c.bf16 %v239, %v239
    %v331 = vpack.c.bf16 %v241, %v241
    %v334 = vunpack.c.l.b16 %v326
    %v335 = vunpack.c.l.b16 %v327
    %v336 = vpack.c.b16 %v335, %v334
    %v339 = vunpack.c.l.b16 %v328
    %v340 = vunpack.c.l.b16 %v329
    %v341 = vpack.c.b16 %v340, %v339
    %vm342 = vcmask 64512
    %v344 = vsel %vm342, %v336, 0
    %v347 = vsel %vm342, %v341, 0
    %349 = vmatpush.bf16.xpose.msra.mxu0 0
    %350 = vmatpush.bf16.xpose.msra.mxu0 0
    %351 = vmatpush.bf16.xpose.msra.mxu0 0
    %352 = vmatpush.bf16.xpose.msra.mxu0 0
    %353 = vmatpush.bf16.xpose.msra.mxu0 0
    %354 = vmatpush.bf16.xpose.msra.mxu0 0
    %355 = vmatpush.bf16.xpose.msra.mxu0 0
    %356 = vmatpush.bf16.xpose.msra.mxu0 %v347
    %357 = vmatmul.bf16.gmra.mxu0 %v344
    %v358 = vpop.f32.mrf.mxu0
    %v359 = vadd.f32 %v322, %v358
    %v360 = vpop.f32.mrf.mxu0
    %v361 = vadd.f32 %v323, %v360
    %362 = vdwg.mxu0
    %vm363 = vcmask 130048
    %v364 = vsel %vm363, %v359, -inf
    %365 = vmax.xlane.f32.xlu0 %v364
    %v366 = vpop.xlane.xlu0 %365
    %v367 = vsel %vm363, %v361, -inf
    %368 = vmax.xlane.f32.xlu0 %v367
    %v369 = vpop.xlane.xlu0 %368
    %v370 = vsub.f32 %v359, %v366
    %v371 = vsub.f32 %v361, %v369
    %v372 = vmul.f32 %v370, 1.442695
    %v373 = vpow.pop %v372
    %v374 = vmul.f32 %v371, 1.442695
    %v375 = vpow.pop %v374
    %v376 = vsel %vm363, %v373, 0.0
    %377 = vadd.xlane.f32.xlu0 %v376
    %v378 = vpop.xlane.xlu0 %377
    %v379 = vsel %vm363, %v375, 0.0
    %380 = vadd.xlane.f32.xlu0 %v379
    %v381 = vpop.xlane.xlu0 %380
    %v382 = vrcp.pop %v378
    %v383 = vmul.f32 %v378, %v382
    %v384 = vsub.f32 1.0, %v383
    %v385 = vmul.f32 %v382, %v384
    %v386 = vadd.f32 %v382, %v385
    %vm387 = vweird.f32 %v378
    %vm388 = vweird.f32 %v382
    %vm389 = vmor %vm387, %vm388
    %v390 = vsel %vm389, %v382, %v386
    %v391 = vand.u32 2147483647, %v378
    %vm392 = vcmp.eq.f32.partialorder %v391, 8.507059e+37
    %v393 = vand.u32 %v378, 2147483648
    %v394 = vor.u32 1.1754944e-38, %v393
    %v395 = vsel %vm392, %v394, %v390
    %v396 = vmul.f32 %v373, %v395
    %v397 = vrcp.pop %v381
    %v398 = vmul.f32 %v381, %v397
    %v399 = vsub.f32 1.0, %v398
    %v400 = vmul.f32 %v397, %v399
    %v401 = vadd.f32 %v397, %v400
    %vm402 = vweird.f32 %v381
    %vm403 = vweird.f32 %v397
    %vm404 = vmor %vm402, %vm403
    %v405 = vsel %vm404, %v397, %v401
    %v406 = vand.u32 2147483647, %v381
    %vm407 = vcmp.eq.f32.partialorder %v406, 8.507059e+37
    %v408 = vand.u32 %v381, 2147483648
    %v409 = vor.u32 1.1754944e-38, %v408
    %v410 = vsel %vm407, %v409, %v405
    %v411 = vmul.f32 %v375, %v410
    %v412 = vpack.c.bf16 %v411, %v396
    %v415 = vunpack.c.l.b16 %v330
    %v416 = vunpack.c.l.b16 %v331
    %v417 = vpack.c.b16 %v416, %v415
    %v420 = vsel %vm363, %v412, 0
    %422 = vmatpush.bf16.msra.mxu0 0
    %423 = vmatpush.bf16.msra.mxu0 0
    %424 = vmatpush.bf16.msra.mxu0 0
    %425 = vmatpush.bf16.msra.mxu0 0
    %426 = vmatpush.bf16.msra.mxu0 0
    %427 = vmatpush.bf16.msra.mxu0 0
    %428 = vmatpush.bf16.msra.mxu0 0
    %429 = vmatpush.bf16.msra.mxu0 %v417
    %430 = vmatmul.bf16.gmra.mxu0 %v420
    %v431 = vpop.f32.mrf.mxu0
    %v432 = vadd.f32 0.0, %v431
    %v433 = vpop.f32.mrf.mxu0
    %v434 = vadd.f32 0.0, %v433
    %435 = vdwg.mxu0
    %436 = vrot.lane.b32.xlu0 %v336, 120
    %v437 = vpop.permute.xlu0 %436
    %438 = vrot.lane.b32.xlu0 %v341, 120
    %v439 = vpop.permute.xlu0 %438
    %v441 = vsel %vm342, %v437, 0
    %v444 = vsel %vm342, %v439, 0
    %446 = vmatpush.bf16.xpose.msra.mxu0 0
    %447 = vmatpush.bf16.xpose.msra.mxu0 0
    %448 = vmatpush.bf16.xpose.msra.mxu0 0
    %449 = vmatpush.bf16.xpose.msra.mxu0 0
    %450 = vmatpush.bf16.xpose.msra.mxu0 0
    %451 = vmatpush.bf16.xpose.msra.mxu0 0
    %452 = vmatpush.bf16.xpose.msra.mxu0 0
    %453 = vmatpush.bf16.xpose.msra.mxu0 %v444
    %454 = vmatmul.bf16.gmra.mxu0 %v441
    %v455 = vpop.f32.mrf.mxu0
    %v456 = vadd.f32 %v322, %v455
    %v457 = vpop.f32.mrf.mxu0
    %v458 = vadd.f32 %v323, %v457
    %459 = vdwg.mxu0
    %v460 = vsel %vm363, %v456, -inf
    %461 = vmax.xlane.f32.xlu0 %v460
    %v462 = vpop.xlane.xlu0 %461
    %v463 = vsel %vm363, %v458, -inf
    %464 = vmax.xlane.f32.xlu0 %v463
    %v465 = vpop.xlane.xlu0 %464
    %v466 = vsub.f32 %v456, %v462
    %v467 = vsub.f32 %v458, %v465
    %v468 = vmul.f32 %v466, 1.442695
    %v469 = vpow.pop %v468
    %v470 = vmul.f32 %v467, 1.442695
    %v471 = vpow.pop %v470
    %v472 = vsel %vm363, %v469, 0.0
    %473 = vadd.xlane.f32.xlu0 %v472
    %v474 = vpop.xlane.xlu0 %473
    %v475 = vsel %vm363, %v471, 0.0
    %476 = vadd.xlane.f32.xlu0 %v475
    %v477 = vpop.xlane.xlu0 %476
    %v478 = vrcp.pop %v474
    %v479 = vmul.f32 %v474, %v478
    %v480 = vsub.f32 1.0, %v479
    %v481 = vmul.f32 %v478, %v480
    %v482 = vadd.f32 %v478, %v481
    %vm483 = vweird.f32 %v474
    %vm484 = vweird.f32 %v478
    %vm485 = vmor %vm483, %vm484
    %v486 = vsel %vm485, %v478, %v482
    %v487 = vand.u32 2147483647, %v474
    %vm488 = vcmp.eq.f32.partialorder %v487, 8.507059e+37
    %v489 = vand.u32 %v474, 2147483648
    %v490 = vor.u32 1.1754944e-38, %v489
    %v491 = vsel %vm488, %v490, %v486
    %v492 = vmul.f32 %v469, %v491
    %v493 = vrcp.pop %v477
    %v494 = vmul.f32 %v477, %v493
    %v495 = vsub.f32 1.0, %v494
    %v496 = vmul.f32 %v493, %v495
    %v497 = vadd.f32 %v493, %v496
    %vm498 = vweird.f32 %v477
    %vm499 = vweird.f32 %v493
    %vm500 = vmor %vm498, %vm499
    %v501 = vsel %vm500, %v493, %v497
    %v502 = vand.u32 2147483647, %v477
    %vm503 = vcmp.eq.f32.partialorder %v502, 8.507059e+37
    %v504 = vand.u32 %v477, 2147483648
    %v505 = vor.u32 1.1754944e-38, %v504
    %v506 = vsel %vm503, %v505, %v501
    %v507 = vmul.f32 %v471, %v506
    %v508 = vpack.c.bf16 %v507, %v492
    %509 = vrot.lane.b32.xlu0 %v417, 120
    %v510 = vpop.permute.xlu0 %509
    %v513 = vsel %vm363, %v508, 0
    %515 = vmatpush.bf16.msra.mxu0 0
    %516 = vmatpush.bf16.msra.mxu0 0
    %517 = vmatpush.bf16.msra.mxu0 0
    %518 = vmatpush.bf16.msra.mxu0 0
    %519 = vmatpush.bf16.msra.mxu0 0
    %520 = vmatpush.bf16.msra.mxu0 0
    %521 = vmatpush.bf16.msra.mxu0 0
    %522 = vmatpush.bf16.msra.mxu0 %v510
    %523 = vmatmul.bf16.gmra.mxu0 %v513
    %v524 = vpop.f32.mrf.mxu0
    %v525 = vadd.f32 0.0, %v524
    %v526 = vpop.f32.mrf.mxu0
    %v527 = vadd.f32 0.0, %v526
    %528 = vdwg.mxu0
    %529 = vrot.lane.b32.xlu0 %v336, 112
    %v530 = vpop.permute.xlu0 %529
    %531 = vrot.lane.b32.xlu0 %v341, 112
    %v532 = vpop.permute.xlu0 %531
    %v534 = vsel %vm342, %v530, 0
    %v537 = vsel %vm342, %v532, 0
    %539 = vmatpush.bf16.xpose.msra.mxu0 0
    %540 = vmatpush.bf16.xpose.msra.mxu0 0
    %541 = vmatpush.bf16.xpose.msra.mxu0 0
    %542 = vmatpush.bf16.xpose.msra.mxu0 0
    %543 = vmatpush.bf16.xpose.msra.mxu0 0
    %544 = vmatpush.bf16.xpose.msra.mxu0 0
    %545 = vmatpush.bf16.xpose.msra.mxu0 0
    %546 = vmatpush.bf16.xpose.msra.mxu0 %v537
    %547 = vmatmul.bf16.gmra.mxu0 %v534
    %v548 = vpop.f32.mrf.mxu0
    %v549 = vadd.f32 %v322, %v548
    %v550 = vpop.f32.mrf.mxu0
    %v551 = vadd.f32 %v323, %v550
    %552 = vdwg.mxu0
    %v553 = vsel %vm363, %v549, -inf
    %554 = vmax.xlane.f32.xlu0 %v553
    %v555 = vpop.xlane.xlu0 %554
    %v556 = vsel %vm363, %v551, -inf
    %557 = vmax.xlane.f32.xlu0 %v556
    %v558 = vpop.xlane.xlu0 %557
    %v559 = vsub.f32 %v549, %v555
    %v560 = vsub.f32 %v551, %v558
    %v561 = vmul.f32 %v559, 1.442695
    %v562 = vpow.pop %v561
    %v563 = vmul.f32 %v560, 1.442695
    %v564 = vpow.pop %v563
    %v565 = vsel %vm363, %v562, 0.0
    %566 = vadd.xlane.f32.xlu0 %v565
    %v567 = vpop.xlane.xlu0 %566
    %v568 = vsel %vm363, %v564, 0.0
    %569 = vadd.xlane.f32.xlu0 %v568
    %v570 = vpop.xlane.xlu0 %569
    %v571 = vrcp.pop %v567
    %v572 = vmul.f32 %v567, %v571
    %v573 = vsub.f32 1.0, %v572
    %v574 = vmul.f32 %v571, %v573
    %v575 = vadd.f32 %v571, %v574
    %vm576 = vweird.f32 %v567
    %vm577 = vweird.f32 %v571
    %vm578 = vmor %vm576, %vm577
    %v579 = vsel %vm578, %v571, %v575
    %v580 = vand.u32 2147483647, %v567
    %vm581 = vcmp.eq.f32.partialorder %v580, 8.507059e+37
    %v582 = vand.u32 %v567, 2147483648
    %v583 = vor.u32 1.1754944e-38, %v582
    %v584 = vsel %vm581, %v583, %v579
    %v585 = vmul.f32 %v562, %v584
    %v586 = vrcp.pop %v570
    %v587 = vmul.f32 %v570, %v586
    %v588 = vsub.f32 1.0, %v587
    %v589 = vmul.f32 %v586, %v588
    %v590 = vadd.f32 %v586, %v589
    %vm591 = vweird.f32 %v570
    %vm592 = vweird.f32 %v586
    %vm593 = vmor %vm591, %vm592
    %v594 = vsel %vm593, %v586, %v590
    %v595 = vand.u32 2147483647, %v570
    %vm596 = vcmp.eq.f32.partialorder %v595, 8.507059e+37
    %v597 = vand.u32 %v570, 2147483648
    %v598 = vor.u32 1.1754944e-38, %v597
    %v599 = vsel %vm596, %v598, %v594
    %v600 = vmul.f32 %v564, %v599
    %v601 = vpack.c.bf16 %v600, %v585
    %602 = vrot.lane.b32.xlu0 %v417, 112
    %v603 = vpop.permute.xlu0 %602
    %v606 = vsel %vm363, %v601, 0
    %608 = vmatpush.bf16.msra.mxu0 0
    %609 = vmatpush.bf16.msra.mxu0 0
    %610 = vmatpush.bf16.msra.mxu0 0
    %611 = vmatpush.bf16.msra.mxu0 0
    %612 = vmatpush.bf16.msra.mxu0 0
    %613 = vmatpush.bf16.msra.mxu0 0
    %614 = vmatpush.bf16.msra.mxu0 0
    %615 = vmatpush.bf16.msra.mxu0 %v603
    %616 = vmatmul.bf16.gmra.mxu0 %v606
    %v617 = vpop.f32.mrf.mxu0
    %v618 = vadd.f32 0.0, %v617
    %v619 = vpop.f32.mrf.mxu0
    %v620 = vadd.f32 0.0, %v619
    %621 = vdwg.mxu0
    %622 = vrot.lane.b32.xlu0 %v336, 104
    %v623 = vpop.permute.xlu0 %622
    %624 = vrot.lane.b32.xlu0 %v341, 104
    %v625 = vpop.permute.xlu0 %624
    %v627 = vsel %vm342, %v623, 0
    %v630 = vsel %vm342, %v625, 0
    %632 = vmatpush.bf16.xpose.msra.mxu0 0
    %633 = vmatpush.bf16.xpose.msra.mxu0 0
    %634 = vmatpush.bf16.xpose.msra.mxu0 0
    %635 = vmatpush.bf16.xpose.msra.mxu0 0
    %636 = vmatpush.bf16.xpose.msra.mxu0 0
    %637 = vmatpush.bf16.xpose.msra.mxu0 0
    %638 = vmatpush.bf16.xpose.msra.mxu0 0
    %639 = vmatpush.bf16.xpose.msra.mxu0 %v630
    %640 = vmatmul.bf16.gmra.mxu0 %v627
    %v641 = vpop.f32.mrf.mxu0
    %v642 = vadd.f32 %v322, %v641
    %v643 = vpop.f32.mrf.mxu0
    %v644 = vadd.f32 %v323, %v643
    %645 = vdwg.mxu0
    %v646 = vsel %vm363, %v642, -inf
    %647 = vmax.xlane.f32.xlu0 %v646
    %v648 = vpop.xlane.xlu0 %647
    %v649 = vsel %vm363, %v644, -inf
    %650 = vmax.xlane.f32.xlu0 %v649
    %v651 = vpop.xlane.xlu0 %650
    %v652 = vsub.f32 %v642, %v648
    %v653 = vsub.f32 %v644, %v651
    %v654 = vmul.f32 %v652, 1.442695
    %v655 = vpow.pop %v654
    %v656 = vmul.f32 %v653, 1.442695
    %v657 = vpow.pop %v656
    %v658 = vsel %vm363, %v655, 0.0
    %659 = vadd.xlane.f32.xlu0 %v658
    %v660 = vpop.xlane.xlu0 %659
    %v661 = vsel %vm363, %v657, 0.0
    %662 = vadd.xlane.f32.xlu0 %v661
    %v663 = vpop.xlane.xlu0 %662
    %v664 = vrcp.pop %v660
    %v665 = vmul.f32 %v660, %v664
    %v666 = vsub.f32 1.0, %v665
    %v667 = vmul.f32 %v664, %v666
    %v668 = vadd.f32 %v664, %v667
    %vm669 = vweird.f32 %v660
    %vm670 = vweird.f32 %v664
    %vm671 = vmor %vm669, %vm670
    %v672 = vsel %vm671, %v664, %v668
    %v673 = vand.u32 2147483647, %v660
    %vm674 = vcmp.eq.f32.partialorder %v673, 8.507059e+37
    %v675 = vand.u32 %v660, 2147483648
    %v676 = vor.u32 1.1754944e-38, %v675
    %v677 = vsel %vm674, %v676, %v672
    %v678 = vmul.f32 %v655, %v677
    %v679 = vrcp.pop %v663
    %v680 = vmul.f32 %v663, %v679
    %v681 = vsub.f32 1.0, %v680
    %v682 = vmul.f32 %v679, %v681
    %v683 = vadd.f32 %v679, %v682
    %vm684 = vweird.f32 %v663
    %vm685 = vweird.f32 %v679
    %vm686 = vmor %vm684, %vm685
    %v687 = vsel %vm686, %v679, %v683
    %v688 = vand.u32 2147483647, %v663
    %vm689 = vcmp.eq.f32.partialorder %v688, 8.507059e+37
    %v690 = vand.u32 %v663, 2147483648
    %v691 = vor.u32 1.1754944e-38, %v690
    %v692 = vsel %vm689, %v691, %v687
    %v693 = vmul.f32 %v657, %v692
    %v694 = vpack.c.bf16 %v693, %v678
    %695 = vrot.lane.b32.xlu0 %v417, 104
    %v696 = vpop.permute.xlu0 %695
    %v699 = vsel %vm363, %v694, 0
    %701 = vmatpush.bf16.msra.mxu0 0
    %702 = vmatpush.bf16.msra.mxu0 0
    %703 = vmatpush.bf16.msra.mxu0 0
    %704 = vmatpush.bf16.msra.mxu0 0
    %705 = vmatpush.bf16.msra.mxu0 0
    %706 = vmatpush.bf16.msra.mxu0 0
    %707 = vmatpush.bf16.msra.mxu0 0
    %708 = vmatpush.bf16.msra.mxu0 %v696
    %709 = vmatmul.bf16.gmra.mxu0 %v699
    %v710 = vpop.f32.mrf.mxu0
    %v711 = vadd.f32 0.0, %v710
    %v712 = vpop.f32.mrf.mxu0
    %v713 = vadd.f32 0.0, %v712
    %714 = vdwg.mxu0
    %717 = vrot.lane.b32.xlu0 %v525, 8
    %v718 = vpop.permute.xlu0 %717
    %719 = vrot.lane.b32.xlu0 %v527, 8
    %v720 = vpop.permute.xlu0 %719
    %725 = vrot.lane.b32.xlu0 %v618, 16
    %v726 = vpop.permute.xlu0 %725
    %727 = vrot.lane.b32.xlu0 %v620, 16
    %v728 = vpop.permute.xlu0 %727
    %733 = vrot.lane.b32.xlu0 %v711, 24
    %v734 = vpop.permute.xlu0 %733
    %735 = vrot.lane.b32.xlu0 %v713, 24
    %v736 = vpop.permute.xlu0 %735
    %v739 = vsel %vm342, %v432, %v718
    %v740 = vsel %vm342, %v434, %v720
    %v741 = vsel %vm363, %v739, %v726
    %v742 = vsel %vm363, %v740, %v728
    %vm743 = vcmask 195584
    %v744 = vsel %vm743, %v741, %v734
    %v745 = vsel %vm743, %v742, %v736
    %v746 = vpack.c.bf16 %v745, %v744
    %v748 = vperm.slane %v98, 0
    %v754 = vunpack.c.l.b16 %v94
    %v755 = vunpack.c.l.b16 %v95
    %v756 = vunpack.c.l.b16 %v96
    %v757 = vunpack.c.l.b16 %v97
    %v758 = vpack.c.b16 %v755, %v754
    %v759 = vpack.c.b16 %v757, %v756
    %v761 = vsel %vm145, %v746, 0
    %v764 = vsel %vm145, %v758, 0
    %v767 = vsel %vm145, %v759, 0
    %769 = vmatpush.bf16.xpose.msra.mxu0 0
    %770 = vmatpush.bf16.xpose.msra.mxu0 0
    %771 = vmatpush.bf16.xpose.msra.mxu0 0
    %772 = vmatpush.bf16.xpose.msra.mxu0 0
    %773 = vmatpush.bf16.xpose.msra.mxu0 0
    %774 = vmatpush.bf16.xpose.msra.mxu0 0
    %775 = vmatpush.bf16.xpose.msra.mxu0 %v767
    %776 = vmatpush.bf16.xpose.msra.mxu0 %v764
    %777 = vmatmul.bf16.gmra.mxu0 %v761
    %v778 = vpop.f32.mrf.mxu0
    %v779 = vadd.f32 %v748, %v778
    %v780 = vpop.f32.mrf.mxu0
    %v781 = vadd.f32 %v748, %v780
    %782 = vdwg.mxu0
    %v783 = vadd.f32 %v113, %v779
    %v784 = vadd.f32 %v114, %v781
    %v785 = vsel %vm145, %v783, 0.0
    %786 = vadd.xlane.f32.xlu0 %v785
    %v787 = vpop.xlane.xlu0 %786
    %v788 = vsel %vm145, %v784, 0.0
    %789 = vadd.xlane.f32.xlu0 %v788
    %v790 = vpop.xlane.xlu0 %789
    %v791 = vrcp.pop 32.0
    %v792 = vmul.f32 32.0, %v791
    %v793 = vsub.f32 1.0, %v792
    %v794 = vmul.f32 %v791, %v793
    %v795 = vadd.f32 %v791, %v794
    %vm796 = vweird.f32 %v791
    %v797 = vsel %vm796, %v791, %v795
    %v798 = vmul.f32 %v787, %v797
    %v799 = vmul.f32 %v790, %v797
    %v800 = vsub.f32 %v783, %v798
    %v801 = vsub.f32 %v784, %v799
    %v802 = vmul.f32 %v800, %v800
    %v803 = vmul.f32 %v801, %v801
    %v804 = vsel %vm145, %v802, 0.0
    %805 = vadd.xlane.f32.xlu0 %v804
    %v806 = vpop.xlane.xlu0 %805
    %v807 = vsel %vm145, %v803, 0.0
    %808 = vadd.xlane.f32.xlu0 %v807
    %v809 = vpop.xlane.xlu0 %808
    %v810 = vmul.f32 %v806, %v797
    %v811 = vmul.f32 %v809, %v797
    %v812 = vadd.f32 %v810, 1e-05
    %v813 = vadd.f32 %v811, 1e-05
    %v814 = vrsqrt.pop %v812
    %v815 = vmul.f32 %v814, %v812
    %v816 = vmul.f32 %v815, %v814
    %v817 = vmul.f32 0.5, %v816
    %v818 = vsub.f32 1.5, %v817
    %v819 = vmul.f32 %v814, %v818
    %vm820 = vweird.f32 %v812
    %vm821 = vweird.f32 %v814
    %vm822 = vmor %vm820, %vm821
    %v823 = vsel %vm822, %v814, %v819
    %v824 = vrsqrt.pop %v813
    %v825 = vmul.f32 %v824, %v813
    %v826 = vmul.f32 %v825, %v824
    %v827 = vmul.f32 0.5, %v826
    %v828 = vsub.f32 1.5, %v827
    %v829 = vmul.f32 %v824, %v828
    %vm830 = vweird.f32 %v813
    %vm831 = vweird.f32 %v824
    %vm832 = vmor %vm830, %vm831
    %v833 = vsel %vm832, %v824, %v829
    %v834 = vmul.f32 %v800, %v823
    %v835 = vmul.f32 %v801, %v833
    %v836 = vld [vmem:[%s18] sm:$0x1]
    %v838 = vperm.slane %v836, 0
    %v840 = vmul.f32 %v834, %v838
    %v841 = vmul.f32 %v835, %v838
    %v842 = vld [vmem:[%s19] sm:$0x1]
    %v844 = vperm.slane %v842, 0
    %v846 = vadd.f32 %v840, %v844
    %v847 = vadd.f32 %v841, %v844
    %v848 = vpack.c.bf16 %v847, %v846
    %v850 = vsel %vm145, %v848, 0
    %852 = vmatpush.bf16.xpose.msra.mxu0 0
    %853 = vmatpush.bf16.xpose.msra.mxu0 0
    %854 = vmatpush.bf16.xpose.msra.mxu0 0
    %855 = vmatpush.bf16.xpose.msra.mxu0 0
    %856 = vmatpush.bf16.xpose.msra.mxu0 0
    %857 = vmatpush.bf16.xpose.msra.mxu0 0
    %858 = vmatpush.bf16.xpose.msra.mxu0 %v153
    %859 = vmatpush.bf16.xpose.msra.mxu0 %v150
    %860 = vmatmul.bf16.gmra.mxu0 %v850
    %v861 = vpop.f32.mrf.mxu0
    %v862 = vadd.f32 %v133, %v861
    %v863 = vpop.f32.mrf.mxu0
    %v864 = vadd.f32 %v133, %v863
    %865 = vdwg.mxu0
    %v866 = vmul.f32 %v862, 0.35355338
    %v867 = vmul.f32 %v864, 0.35355338
    %v868 = vpack.c.bf16 %v866, %v866
    %v869 = vpack.c.bf16 %v867, %v867
    %v870 = vpack.c.bf16 %v257, %v257
    %v871 = vpack.c.bf16 %v259, %v259
    %v872 = vpack.c.bf16 %v275, %v275
    %v873 = vpack.c.bf16 %v277, %v277
    %v876 = vunpack.c.l.b16 %v868
    %v877 = vunpack.c.l.b16 %v869
    %v878 = vpack.c.b16 %v877, %v876
    %v881 = vunpack.c.l.b16 %v870
    %v882 = vunpack.c.l.b16 %v871
    %v883 = vpack.c.b16 %v882, %v881
    %v885 = vsel %vm342, %v878, 0
    %v888 = vsel %vm342, %v883, 0
    %890 = vmatpush.bf16.xpose.msra.mxu0 0
    %891 = vmatpush.bf16.xpose.msra.mxu0 0
    %892 = vmatpush.bf16.xpose.msra.mxu0 0
    %893 = vmatpush.bf16.xpose.msra.mxu0 0
    %894 = vmatpush.bf16.xpose.msra.mxu0 0
    %895 = vmatpush.bf16.xpose.msra.mxu0 0
    %896 = vmatpush.bf16.xpose.msra.mxu0 0
    %897 = vmatpush.bf16.xpose.msra.mxu0 %v888
    %898 = vmatmul.bf16.gmra.mxu0 %v885
    %v899 = vpop.f32.mrf.mxu0
    %v900 = vadd.f32 %v322, %v899
    %v901 = vpop.f32.mrf.mxu0
    %v902 = vadd.f32 %v323, %v901
    %903 = vdwg.mxu0
    %v904 = vsel %vm363, %v900, -inf
    %905 = vmax.xlane.f32.xlu0 %v904
    %v906 = vpop.xlane.xlu0 %905
    %v907 = vsel %vm363, %v902, -inf
    %908 = vmax.xlane.f32.xlu0 %v907
    %v909 = vpop.xlane.xlu0 %908
    %v910 = vsub.f32 %v900, %v906
    %v911 = vsub.f32 %v902, %v909
    %v912 = vmul.f32 %v910, 1.442695
    %v913 = vpow.pop %v912
    %v914 = vmul.f32 %v911, 1.442695
    %v915 = vpow.pop %v914
    %v916 = vsel %vm363, %v913, 0.0
    %917 = vadd.xlane.f32.xlu0 %v916
    %v918 = vpop.xlane.xlu0 %917
    %v919 = vsel %vm363, %v915, 0.0
    %920 = vadd.xlane.f32.xlu0 %v919
    %v921 = vpop.xlane.xlu0 %920
    %v922 = vrcp.pop %v918
    %v923 = vmul.f32 %v918, %v922
    %v924 = vsub.f32 1.0, %v923
    %v925 = vmul.f32 %v922, %v924
    %v926 = vadd.f32 %v922, %v925
    %vm927 = vweird.f32 %v918
    %vm928 = vweird.f32 %v922
    %vm929 = vmor %vm927, %vm928
    %v930 = vsel %vm929, %v922, %v926
    %v931 = vand.u32 2147483647, %v918
    %vm932 = vcmp.eq.f32.partialorder %v931, 8.507059e+37
    %v933 = vand.u32 %v918, 2147483648
    %v934 = vor.u32 1.1754944e-38, %v933
    %v935 = vsel %vm932, %v934, %v930
    %v936 = vmul.f32 %v913, %v935
    %v937 = vrcp.pop %v921
    %v938 = vmul.f32 %v921, %v937
    %v939 = vsub.f32 1.0, %v938
    %v940 = vmul.f32 %v937, %v939
    %v941 = vadd.f32 %v937, %v940
    %vm942 = vweird.f32 %v921
    %vm943 = vweird.f32 %v937
    %vm944 = vmor %vm942, %vm943
    %v945 = vsel %vm944, %v937, %v941
    %v946 = vand.u32 2147483647, %v921
    %vm947 = vcmp.eq.f32.partialorder %v946, 8.507059e+37
    %v948 = vand.u32 %v921, 2147483648
    %v949 = vor.u32 1.1754944e-38, %v948
    %v950 = vsel %vm947, %v949, %v945
    %v951 = vmul.f32 %v915, %v950
    %v952 = vpack.c.bf16 %v951, %v936
    %v955 = vunpack.c.l.b16 %v872
    %v956 = vunpack.c.l.b16 %v873
    %v957 = vpack.c.b16 %v956, %v955
    %v960 = vsel %vm363, %v952, 0
    %962 = vmatpush.bf16.msra.mxu0 0
    %963 = vmatpush.bf16.msra.mxu0 0
    %964 = vmatpush.bf16.msra.mxu0 0
    %965 = vmatpush.bf16.msra.mxu0 0
    %966 = vmatpush.bf16.msra.mxu0 0
    %967 = vmatpush.bf16.msra.mxu0 0
    %968 = vmatpush.bf16.msra.mxu0 0
    %969 = vmatpush.bf16.msra.mxu0 %v957
    %970 = vmatmul.bf16.gmra.mxu0 %v960
    %v971 = vpop.f32.mrf.mxu0
    %v972 = vadd.f32 0.0, %v971
    %v973 = vpop.f32.mrf.mxu0
    %v974 = vadd.f32 0.0, %v973
    %975 = vdwg.mxu0
    %976 = vrot.lane.b32.xlu0 %v878, 120
    %v977 = vpop.permute.xlu0 %976
    %978 = vrot.lane.b32.xlu0 %v883, 120
    %v979 = vpop.permute.xlu0 %978
    %v981 = vsel %vm342, %v977, 0
    %v984 = vsel %vm342, %v979, 0
    %986 = vmatpush.bf16.xpose.msra.mxu0 0
    %987 = vmatpush.bf16.xpose.msra.mxu0 0
    %988 = vmatpush.bf16.xpose.msra.mxu0 0
    %989 = vmatpush.bf16.xpose.msra.mxu0 0
    %990 = vmatpush.bf16.xpose.msra.mxu0 0
    %991 = vmatpush.bf16.xpose.msra.mxu0 0
    %992 = vmatpush.bf16.xpose.msra.mxu0 0
    %993 = vmatpush.bf16.xpose.msra.mxu0 %v984
    %994 = vmatmul.bf16.gmra.mxu0 %v981
    %v995 = vpop.f32.mrf.mxu0
    %v996 = vadd.f32 %v322, %v995
    %v997 = vpop.f32.mrf.mxu0
    %v998 = vadd.f32 %v323, %v997
    %999 = vdwg.mxu0
    %v1000 = vsel %vm363, %v996, -inf
    %1001 = vmax.xlane.f32.xlu0 %v1000
    %v1002 = vpop.xlane.xlu0 %1001
    %v1003 = vsel %vm363, %v998, -inf
    %1004 = vmax.xlane.f32.xlu0 %v1003
    %v1005 = vpop.xlane.xlu0 %1004
    %v1006 = vsub.f32 %v996, %v1002
    %v1007 = vsub.f32 %v998, %v1005
    %v1008 = vmul.f32 %v1006, 1.442695
    %v1009 = vpow.pop %v1008
    %v1010 = vmul.f32 %v1007, 1.442695
    %v1011 = vpow.pop %v1010
    %v1012 = vsel %vm363, %v1009, 0.0
    %1013 = vadd.xlane.f32.xlu0 %v1012
    %v1014 = vpop.xlane.xlu0 %1013
    %v1015 = vsel %vm363, %v1011, 0.0
    %1016 = vadd.xlane.f32.xlu0 %v1015
    %v1017 = vpop.xlane.xlu0 %1016
    %v1018 = vrcp.pop %v1014
    %v1019 = vmul.f32 %v1014, %v1018
    %v1020 = vsub.f32 1.0, %v1019
    %v1021 = vmul.f32 %v1018, %v1020
    %v1022 = vadd.f32 %v1018, %v1021
    %vm1023 = vweird.f32 %v1014
    %vm1024 = vweird.f32 %v1018
    %vm1025 = vmor %vm1023, %vm1024
    %v1026 = vsel %vm1025, %v1018, %v1022
    %v1027 = vand.u32 2147483647, %v1014
    %vm1028 = vcmp.eq.f32.partialorder %v1027, 8.507059e+37
    %v1029 = vand.u32 %v1014, 2147483648
    %v1030 = vor.u32 1.1754944e-38, %v1029
    %v1031 = vsel %vm1028, %v1030, %v1026
    %v1032 = vmul.f32 %v1009, %v1031
    %v1033 = vrcp.pop %v1017
    %v1034 = vmul.f32 %v1017, %v1033
    %v1035 = vsub.f32 1.0, %v1034
    %v1036 = vmul.f32 %v1033, %v1035
    %v1037 = vadd.f32 %v1033, %v1036
    %vm1038 = vweird.f32 %v1017
    %vm1039 = vweird.f32 %v1033
    %vm1040 = vmor %vm1038, %vm1039
    %v1041 = vsel %vm1040, %v1033, %v1037
    %v1042 = vand.u32 2147483647, %v1017
    %vm1043 = vcmp.eq.f32.partialorder %v1042, 8.507059e+37
    %v1044 = vand.u32 %v1017, 2147483648
    %v1045 = vor.u32 1.1754944e-38, %v1044
    %v1046 = vsel %vm1043, %v1045, %v1041
    %v1047 = vmul.f32 %v1011, %v1046
    %v1048 = vpack.c.bf16 %v1047, %v1032
    %1049 = vrot.lane.b32.xlu0 %v957, 120
    %v1050 = vpop.permute.xlu0 %1049
    %v1053 = vsel %vm363, %v1048, 0
    %1055 = vmatpush.bf16.msra.mxu0 0
    %1056 = vmatpush.bf16.msra.mxu0 0
    %1057 = vmatpush.bf16.msra.mxu0 0
    %1058 = vmatpush.bf16.msra.mxu0 0
    %1059 = vmatpush.bf16.msra.mxu0 0
    %1060 = vmatpush.bf16.msra.mxu0 0
    %1061 = vmatpush.bf16.msra.mxu0 0
    %1062 = vmatpush.bf16.msra.mxu0 %v1050
    %1063 = vmatmul.bf16.gmra.mxu0 %v1053
    %v1064 = vpop.f32.mrf.mxu0
    %v1065 = vadd.f32 0.0, %v1064
    %v1066 = vpop.f32.mrf.mxu0
    %v1067 = vadd.f32 0.0, %v1066
    %1068 = vdwg.mxu0
    %1069 = vrot.lane.b32.xlu0 %v878, 112
    %v1070 = vpop.permute.xlu0 %1069
    %1071 = vrot.lane.b32.xlu0 %v883, 112
    %v1072 = vpop.permute.xlu0 %1071
    %v1074 = vsel %vm342, %v1070, 0
    %v1077 = vsel %vm342, %v1072, 0
    %1079 = vmatpush.bf16.xpose.msra.mxu0 0
    %1080 = vmatpush.bf16.xpose.msra.mxu0 0
    %1081 = vmatpush.bf16.xpose.msra.mxu0 0
    %1082 = vmatpush.bf16.xpose.msra.mxu0 0
    %1083 = vmatpush.bf16.xpose.msra.mxu0 0
    %1084 = vmatpush.bf16.xpose.msra.mxu0 0
    %1085 = vmatpush.bf16.xpose.msra.mxu0 0
    %1086 = vmatpush.bf16.xpose.msra.mxu0 %v1077
    %1087 = vmatmul.bf16.gmra.mxu0 %v1074
    %v1088 = vpop.f32.mrf.mxu0
    %v1089 = vadd.f32 %v322, %v1088
    %v1090 = vpop.f32.mrf.mxu0
    %v1091 = vadd.f32 %v323, %v1090
    %1092 = vdwg.mxu0
    %v1093 = vsel %vm363, %v1089, -inf
    %1094 = vmax.xlane.f32.xlu0 %v1093
    %v1095 = vpop.xlane.xlu0 %1094
    %v1096 = vsel %vm363, %v1091, -inf
    %1097 = vmax.xlane.f32.xlu0 %v1096
    %v1098 = vpop.xlane.xlu0 %1097
    %v1099 = vsub.f32 %v1089, %v1095
    %v1100 = vsub.f32 %v1091, %v1098
    %v1101 = vmul.f32 %v1099, 1.442695
    %v1102 = vpow.pop %v1101
    %v1103 = vmul.f32 %v1100, 1.442695
    %v1104 = vpow.pop %v1103
    %v1105 = vsel %vm363, %v1102, 0.0
    %1106 = vadd.xlane.f32.xlu0 %v1105
    %v1107 = vpop.xlane.xlu0 %1106
    %v1108 = vsel %vm363, %v1104, 0.0
    %1109 = vadd.xlane.f32.xlu0 %v1108
    %v1110 = vpop.xlane.xlu0 %1109
    %v1111 = vrcp.pop %v1107
    %v1112 = vmul.f32 %v1107, %v1111
    %v1113 = vsub.f32 1.0, %v1112
    %v1114 = vmul.f32 %v1111, %v1113
    %v1115 = vadd.f32 %v1111, %v1114
    %vm1116 = vweird.f32 %v1107
    %vm1117 = vweird.f32 %v1111
    %vm1118 = vmor %vm1116, %vm1117
    %v1119 = vsel %vm1118, %v1111, %v1115
    %v1120 = vand.u32 2147483647, %v1107
    %vm1121 = vcmp.eq.f32.partialorder %v1120, 8.507059e+37
    %v1122 = vand.u32 %v1107, 2147483648
    %v1123 = vor.u32 1.1754944e-38, %v1122
    %v1124 = vsel %vm1121, %v1123, %v1119
    %v1125 = vmul.f32 %v1102, %v1124
    %v1126 = vrcp.pop %v1110
    %v1127 = vmul.f32 %v1110, %v1126
    %v1128 = vsub.f32 1.0, %v1127
    %v1129 = vmul.f32 %v1126, %v1128
    %v1130 = vadd.f32 %v1126, %v1129
    %vm1131 = vweird.f32 %v1110
    %vm1132 = vweird.f32 %v1126
    %vm1133 = vmor %vm1131, %vm1132
    %v1134 = vsel %vm1133, %v1126, %v1130
    %v1135 = vand.u32 2147483647, %v1110
    %vm1136 = vcmp.eq.f32.partialorder %v1135, 8.507059e+37
    %v1137 = vand.u32 %v1110, 2147483648
    %v1138 = vor.u32 1.1754944e-38, %v1137
    %v1139 = vsel %vm1136, %v1138, %v1134
    %v1140 = vmul.f32 %v1104, %v1139
    %v1141 = vpack.c.bf16 %v1140, %v1125
    %1142 = vrot.lane.b32.xlu0 %v957, 112
    %v1143 = vpop.permute.xlu0 %1142
    %v1146 = vsel %vm363, %v1141, 0
    %1148 = vmatpush.bf16.msra.mxu0 0
    %1149 = vmatpush.bf16.msra.mxu0 0
    %1150 = vmatpush.bf16.msra.mxu0 0
    %1151 = vmatpush.bf16.msra.mxu0 0
    %1152 = vmatpush.bf16.msra.mxu0 0
    %1153 = vmatpush.bf16.msra.mxu0 0
    %1154 = vmatpush.bf16.msra.mxu0 0
    %1155 = vmatpush.bf16.msra.mxu0 %v1143
    %1156 = vmatmul.bf16.gmra.mxu0 %v1146
    %v1157 = vpop.f32.mrf.mxu0
    %v1158 = vadd.f32 0.0, %v1157
    %v1159 = vpop.f32.mrf.mxu0
    %v1160 = vadd.f32 0.0, %v1159
    %1161 = vdwg.mxu0
    %1162 = vrot.lane.b32.xlu0 %v878, 104
    %v1163 = vpop.permute.xlu0 %1162
    %1164 = vrot.lane.b32.xlu0 %v883, 104
    %v1165 = vpop.permute.xlu0 %1164
    %v1167 = vsel %vm342, %v1163, 0
    %v1170 = vsel %vm342, %v1165, 0
    %1172 = vmatpush.bf16.xpose.msra.mxu0 0
    %1173 = vmatpush.bf16.xpose.msra.mxu0 0
    %1174 = vmatpush.bf16.xpose.msra.mxu0 0
    %1175 = vmatpush.bf16.xpose.msra.mxu0 0
    %1176 = vmatpush.bf16.xpose.msra.mxu0 0
    %1177 = vmatpush.bf16.xpose.msra.mxu0 0
    %1178 = vmatpush.bf16.xpose.msra.mxu0 0
    %1179 = vmatpush.bf16.xpose.msra.mxu0 %v1170
    %1180 = vmatmul.bf16.gmra.mxu0 %v1167
    %v1181 = vpop.f32.mrf.mxu0
    %v1182 = vadd.f32 %v322, %v1181
    %v1183 = vpop.f32.mrf.mxu0
    %v1184 = vadd.f32 %v323, %v1183
    %1185 = vdwg.mxu0
    %v1186 = vsel %vm363, %v1182, -inf
    %1187 = vmax.xlane.f32.xlu0 %v1186
    %v1188 = vpop.xlane.xlu0 %1187
    %v1189 = vsel %vm363, %v1184, -inf
    %1190 = vmax.xlane.f32.xlu0 %v1189
    %v1191 = vpop.xlane.xlu0 %1190
    %v1192 = vsub.f32 %v1182, %v1188
    %v1193 = vsub.f32 %v1184, %v1191
    %v1194 = vmul.f32 %v1192, 1.442695
    %v1195 = vpow.pop %v1194
    %v1196 = vmul.f32 %v1193, 1.442695
    %v1197 = vpow.pop %v1196
    %v1198 = vsel %vm363, %v1195, 0.0
    %1199 = vadd.xlane.f32.xlu0 %v1198
    %v1200 = vpop.xlane.xlu0 %1199
    %v1201 = vsel %vm363, %v1197, 0.0
    %1202 = vadd.xlane.f32.xlu0 %v1201
    %v1203 = vpop.xlane.xlu0 %1202
    %v1204 = vrcp.pop %v1200
    %v1205 = vmul.f32 %v1200, %v1204
    %v1206 = vsub.f32 1.0, %v1205
    %v1207 = vmul.f32 %v1204, %v1206
    %v1208 = vadd.f32 %v1204, %v1207
    %vm1209 = vweird.f32 %v1200
    %vm1210 = vweird.f32 %v1204
    %vm1211 = vmor %vm1209, %vm1210
    %v1212 = vsel %vm1211, %v1204, %v1208
    %v1213 = vand.u32 2147483647, %v1200
    %vm1214 = vcmp.eq.f32.partialorder %v1213, 8.507059e+37
    %v1215 = vand.u32 %v1200, 2147483648
    %v1216 = vor.u32 1.1754944e-38, %v1215
    %v1217 = vsel %vm1214, %v1216, %v1212
    %v1218 = vmul.f32 %v1195, %v1217
    %v1219 = vrcp.pop %v1203
    %v1220 = vmul.f32 %v1203, %v1219
    %v1221 = vsub.f32 1.0, %v1220
    %v1222 = vmul.f32 %v1219, %v1221
    %v1223 = vadd.f32 %v1219, %v1222
    %vm1224 = vweird.f32 %v1203
    %vm1225 = vweird.f32 %v1219
    %vm1226 = vmor %vm1224, %vm1225
    %v1227 = vsel %vm1226, %v1219, %v1223
    %v1228 = vand.u32 2147483647, %v1203
    %vm1229 = vcmp.eq.f32.partialorder %v1228, 8.507059e+37
    %v1230 = vand.u32 %v1203, 2147483648
    %v1231 = vor.u32 1.1754944e-38, %v1230
    %v1232 = vsel %vm1229, %v1231, %v1227
    %v1233 = vmul.f32 %v1197, %v1232
    %v1234 = vpack.c.bf16 %v1233, %v1218
    %1235 = vrot.lane.b32.xlu0 %v957, 104
    %v1236 = vpop.permute.xlu0 %1235
    %v1239 = vsel %vm363, %v1234, 0
    %1241 = vmatpush.bf16.msra.mxu0 0
    %1242 = vmatpush.bf16.msra.mxu0 0
    %1243 = vmatpush.bf16.msra.mxu0 0
    %1244 = vmatpush.bf16.msra.mxu0 0
    %1245 = vmatpush.bf16.msra.mxu0 0
    %1246 = vmatpush.bf16.msra.mxu0 0
    %1247 = vmatpush.bf16.msra.mxu0 0
    %1248 = vmatpush.bf16.msra.mxu0 %v1236
    %1249 = vmatmul.bf16.gmra.mxu0 %v1239
    %v1250 = vpop.f32.mrf.mxu0
    %v1251 = vadd.f32 0.0, %v1250
    %v1252 = vpop.f32.mrf.mxu0
    %v1253 = vadd.f32 0.0, %v1252
    %1254 = vdwg.mxu0
    %1257 = vrot.lane.b32.xlu0 %v1065, 8
    %v1258 = vpop.permute.xlu0 %1257
    %1259 = vrot.lane.b32.xlu0 %v1067, 8
    %v1260 = vpop.permute.xlu0 %1259
    %1265 = vrot.lane.b32.xlu0 %v1158, 16
    %v1266 = vpop.permute.xlu0 %1265
    %1267 = vrot.lane.b32.xlu0 %v1160, 16
    %v1268 = vpop.permute.xlu0 %1267
    %1273 = vrot.lane.b32.xlu0 %v1251, 24
    %v1274 = vpop.permute.xlu0 %1273
    %1275 = vrot.lane.b32.xlu0 %v1253, 24
    %v1276 = vpop.permute.xlu0 %1275
    %v1279 = vsel %vm342, %v972, %v1258
    %v1280 = vsel %vm342, %v974, %v1260
    %v1281 = vsel %vm363, %v1279, %v1266
    %v1282 = vsel %vm363, %v1280, %v1268
    %v1283 = vsel %vm743, %v1281, %v1274
    %v1284 = vsel %vm743, %v1282, %v1276
    %v1285 = vpack.c.bf16 %v1284, %v1283
    %v1287 = vsel %vm145, %v1285, 0
    %1289 = vmatpush.bf16.xpose.msra.mxu0 0
    %1290 = vmatpush.bf16.xpose.msra.mxu0 0
    %1291 = vmatpush.bf16.xpose.msra.mxu0 0
    %1292 = vmatpush.bf16.xpose.msra.mxu0 0
    %1293 = vmatpush.bf16.xpose.msra.mxu0 0
    %1294 = vmatpush.bf16.xpose.msra.mxu0 0
    %1295 = vmatpush.bf16.xpose.msra.mxu0 %v767
    %1296 = vmatpush.bf16.xpose.msra.mxu0 %v764
    %1297 = vmatmul.bf16.gmra.mxu0 %v1287
    %v1298 = vpop.f32.mrf.mxu0
    %v1299 = vadd.f32 %v748, %v1298
    %v1300 = vpop.f32.mrf.mxu0
    %v1301 = vadd.f32 %v748, %v1300
    %1302 = vdwg.mxu0
    %v1303 = vadd.f32 %v113, %v1299
    %v1304 = vadd.f32 %v114, %v1301
    %v1305 = vsel %vm145, %v1303, 0.0
    %1306 = vadd.xlane.f32.xlu0 %v1305
    %v1307 = vpop.xlane.xlu0 %1306
    %v1308 = vsel %vm145, %v1304, 0.0
    %1309 = vadd.xlane.f32.xlu0 %v1308
    %v1310 = vpop.xlane.xlu0 %1309
    %v1311 = vmul.f32 %v1307, %v797
    %v1312 = vmul.f32 %v1310, %v797
    %v1313 = vsub.f32 %v1303, %v1311
    %v1314 = vsub.f32 %v1304, %v1312
    %v1315 = vmul.f32 %v1313, %v1313
    %v1316 = vmul.f32 %v1314, %v1314
    %v1317 = vsel %vm145, %v1315, 0.0
    %1318 = vadd.xlane.f32.xlu0 %v1317
    %v1319 = vpop.xlane.xlu0 %1318
    %v1320 = vsel %vm145, %v1316, 0.0
    %1321 = vadd.xlane.f32.xlu0 %v1320
    %v1322 = vpop.xlane.xlu0 %1321
    %v1323 = vmul.f32 %v1319, %v797
    %v1324 = vmul.f32 %v1322, %v797
    %v1325 = vadd.f32 %v1323, 1e-05
    %v1326 = vadd.f32 %v1324, 1e-05
    %v1327 = vrsqrt.pop %v1325
    %v1328 = vmul.f32 %v1327, %v1325
    %v1329 = vmul.f32 %v1328, %v1327
    %v1330 = vmul.f32 0.5, %v1329
    %v1331 = vsub.f32 1.5, %v1330
    %v1332 = vmul.f32 %v1327, %v1331
    %vm1333 = vweird.f32 %v1325
    %vm1334 = vweird.f32 %v1327
    %vm1335 = vmor %vm1333, %vm1334
    %v1336 = vsel %vm1335, %v1327, %v1332
    %v1337 = vrsqrt.pop %v1326
    %v1338 = vmul.f32 %v1337, %v1326
    %v1339 = vmul.f32 %v1338, %v1337
    %v1340 = vmul.f32 0.5, %v1339
    %v1341 = vsub.f32 1.5, %v1340
    %v1342 = vmul.f32 %v1337, %v1341
    %vm1343 = vweird.f32 %v1326
    %vm1344 = vweird.f32 %v1337
    %vm1345 = vmor %vm1343, %vm1344
    %v1346 = vsel %vm1345, %v1337, %v1342
    %v1347 = vmul.f32 %v1313, %v1336
    %v1348 = vmul.f32 %v1314, %v1346
    %v1349 = vld [vmem:[%s20] sm:$0x1]
    %v1351 = vperm.slane %v1349, 0
    %v1353 = vmul.f32 %v1347, %v1351
    %v1354 = vmul.f32 %v1348, %v1351
    %v1355 = vld [vmem:[%s21] sm:$0x1]
    %v1357 = vperm.slane %v1355, 0
    %v1359 = vadd.f32 %v1353, %v1357
    %v1360 = vadd.f32 %v1354, %v1357
    %v1361 = vpack.c.bf16 %v1360, %v1359
    %v1363 = vperm.slane %v107, 0
    %v1373 = vunpack.c.l.b16 %v99
    %v1374 = vunpack.c.l.b16 %v100
    %v1375 = vunpack.c.l.b16 %v101
    %v1376 = vunpack.c.l.b16 %v102
    %v1377 = vunpack.c.l.b16 %v103
    %v1378 = vunpack.c.l.b16 %v104
    %v1379 = vunpack.c.l.b16 %v105
    %v1380 = vunpack.c.l.b16 %v106
    %v1381 = vpack.c.b16 %v1374, %v1373
    %v1382 = vpack.c.b16 %v1376, %v1375
    %v1383 = vpack.c.b16 %v1378, %v1377
    %v1384 = vpack.c.b16 %v1380, %v1379
    %v1386 = vsel %vm145, %v1361, 0
    %v1389 = vsel %vm145, %v1381, 0
    %v1392 = vsel %vm145, %v1382, 0
    %v1395 = vsel %vm145, %v1383, 0
    %v1398 = vsel %vm145, %v1384, 0
    %1400 = vmatpush.bf16.xpose.msra.mxu0 0
    %1401 = vmatpush.bf16.xpose.msra.mxu0 0
    %1402 = vmatpush.bf16.xpose.msra.mxu0 0
    %1403 = vmatpush.bf16.xpose.msra.mxu0 0
    %1404 = vmatpush.bf16.xpose.msra.mxu0 %v1398
    %1405 = vmatpush.bf16.xpose.msra.mxu0 %v1395
    %1406 = vmatpush.bf16.xpose.msra.mxu0 %v1392
    %1407 = vmatpush.bf16.xpose.msra.mxu0 %v1389
    %1408 = vmatmul.bf16.gmra.mxu0 %v1386
    %v1409 = vpop.f32.mrf.mxu0
    %v1410 = vadd.f32 %v1363, %v1409
    %v1411 = vpop.f32.mrf.mxu0
    %v1412 = vadd.f32 %v1363, %v1411
    %1413 = vdwg.mxu0
    %v1414 = vmax.f32 %v1410, 0.0
    %v1415 = vmax.f32 %v1412, 0.0
    %v1416 = vpack.c.bf16 %v1415, %v1414
    %v1418 = vperm.slane %v112, 0
    %v1424 = vunpack.c.l.b16 %v108
    %v1425 = vunpack.c.l.b16 %v109
    %v1426 = vunpack.c.l.b16 %v110
    %v1427 = vunpack.c.l.b16 %v111
    %v1428 = vpack.c.b16 %v1425, %v1424
    %v1429 = vpack.c.b16 %v1427, %v1426
    %vm1430 = vcmask 523264
    %v1432 = vsel %vm1430, %v1416, 0
    %v1435 = vsel %vm1430, %v1428, 0
    %v1438 = vsel %vm1430, %v1429, 0
    %1440 = vmatpush.bf16.xpose.msra.mxu0 0
    %1441 = vmatpush.bf16.xpose.msra.mxu0 0
    %1442 = vmatpush.bf16.xpose.msra.mxu0 0
    %1443 = vmatpush.bf16.xpose.msra.mxu0 0
    %1444 = vmatpush.bf16.xpose.msra.mxu0 0
    %1445 = vmatpush.bf16.xpose.msra.mxu0 0
    %1446 = vmatpush.bf16.xpose.msra.mxu0 %v1438
    %1447 = vmatpush.bf16.xpose.msra.mxu0 %v1435
    %1448 = vmatmul.bf16.gmra.mxu0 %v1432
    %v1449 = vpop.f32.mrf.mxu0
    %v1450 = vadd.f32 %v1418, %v1449
    %v1451 = vpop.f32.mrf.mxu0
    %v1452 = vadd.f32 %v1418, %v1451
    %1453 = vdwg.mxu0
    %v1454 = vadd.f32 %v1359, %v1450
    %v1455 = vadd.f32 %v1360, %v1452
    %v1456 = vsel %vm145, %v1454, 0.0
    %1457 = vadd.xlane.f32.xlu0 %v1456
    %v1458 = vpop.xlane.xlu0 %1457
    %v1459 = vsel %vm145, %v1455, 0.0
    %1460 = vadd.xlane.f32.xlu0 %v1459
    %v1461 = vpop.xlane.xlu0 %1460
    %v1462 = vmul.f32 %v1458, %v797
    %v1463 = vmul.f32 %v1461, %v797
    %v1464 = vsub.f32 %v1454, %v1462
    %v1465 = vsub.f32 %v1455, %v1463
    %v1466 = vmul.f32 %v1464, %v1464
    %v1467 = vmul.f32 %v1465, %v1465
    %v1468 = vsel %vm145, %v1466, 0.0
    %1469 = vadd.xlane.f32.xlu0 %v1468
    %v1470 = vpop.xlane.xlu0 %1469
    %v1471 = vsel %vm145, %v1467, 0.0
    %1472 = vadd.xlane.f32.xlu0 %v1471
    %v1473 = vpop.xlane.xlu0 %1472
    %v1474 = vmul.f32 %v1470, %v797
    %v1475 = vmul.f32 %v1473, %v797
    %v1476 = vadd.f32 %v1474, 1e-05
    %v1477 = vadd.f32 %v1475, 1e-05
    %v1478 = vrsqrt.pop %v1476
    %v1479 = vmul.f32 %v1478, %v1476
    %v1480 = vmul.f32 %v1479, %v1478
    %v1481 = vmul.f32 0.5, %v1480
    %v1482 = vsub.f32 1.5, %v1481
    %v1483 = vmul.f32 %v1478, %v1482
    %vm1484 = vweird.f32 %v1476
    %vm1485 = vweird.f32 %v1478
    %vm1486 = vmor %vm1484, %vm1485
    %v1487 = vsel %vm1486, %v1478, %v1483
    %v1488 = vrsqrt.pop %v1477
    %v1489 = vmul.f32 %v1488, %v1477
    %v1490 = vmul.f32 %v1489, %v1488
    %v1491 = vmul.f32 0.5, %v1490
    %v1492 = vsub.f32 1.5, %v1491
    %v1493 = vmul.f32 %v1488, %v1492
    %vm1494 = vweird.f32 %v1477
    %vm1495 = vweird.f32 %v1488
    %vm1496 = vmor %vm1494, %vm1495
    %v1497 = vsel %vm1496, %v1488, %v1493
    %v1498 = vmul.f32 %v1464, %v1487
    %v1499 = vmul.f32 %v1465, %v1497
    %v1500 = vld [vmem:[%s22] sm:$0x1]
    %v1502 = vperm.slane %v1500, 0
    %v1504 = vmul.f32 %v1498, %v1502
    %v1505 = vmul.f32 %v1499, %v1502
    %v1506 = vld [vmem:[%s23] sm:$0x1]
    %v1508 = vperm.slane %v1506, 0
    %v1510 = vadd.f32 %v1504, %v1508
    %v1511 = vadd.f32 %v1505, %v1508
    %1512 = vst.msk [vmem:[#allocation2] sm:$0xff] %vm145, %v1510
    %1513 = vst.msk [vmem:[#allocation2 + $0x8] sm:$0xff] %vm145, %v1511
    // Predicated region
    $region98: #{decoder_forward.1} parent=1 // pred_check
      _
    $region99: #{decoder_forward.1} parent=1 // pred_check_branch
      %1515 = sbr.rel (0) target = $region101
    $region100: #{decoder_forward.1} parent=1 // pred_region
      %1517 = vsyncadd [#allocation3], 0
      %s1518 = sshll.u32 [#allocation2], 4
      %s1519 = int_to_ptr.vmem [resolvable:$true] %s1518
      %s1520 = sshll.u32 %s24, 4
      %s1521 = int_to_ptr.hbm [resolvable:$true] %s1520
      %1526 = dma.vmem_to_hbm [thread:$0]  %s1519, 256, %s1521, [#allocation3], 128, 128, 8
    $region101: #{decoder_forward.1} parent=1 // pred_fallthru
      _
    // Predicated region
    $region102: #{decoder_forward.1} parent=1 // pred_check
      _
    $region103: #{decoder_forward.1} parent=1 // pred_check_branch
      %1528 = sbr.rel (0) target = $region105
    $region104: #{decoder_forward.1} parent=1 // pred_region
      %1530 = dma.done [#allocation3], 256
    $region105: #{decoder_forward.1} parent=1 // pred_fallthru
      _
    %1531 = vsyncpa [#allocation3], 1

</llo_original>
